<compile_context>
chip_gen: v7x
topology: tpu7x:2x2x1
jax: 0.10.0
libtpu: 0.0.40
codegen_flags: <defaults>
</compile_context>

<pallas_src>
import functools

import jax
import jax.numpy as jnp
from jax.experimental import pallas as pl
from jax.experimental.pallas import tpu as pltpu

LANE = 128
SUBLANE = 8


def _round_up(x, m):
    return (x + m - 1) // m * m


# ---------------------------------------------------------------------------
# Kernel 1: one GCN layer, grid = (node row tiles, node column reduction).
#   out[i_blk] = act( sum_k A[i_blk, k_blk] @ (X[k_blk] @ W) + b )
# ---------------------------------------------------------------------------
def _gcn_layer_kernel(a_ref, x_ref, w_ref, b_ref, out_ref, acc_ref, *, apply_relu):
    k = pl.program_id(1)

    @pl.when(k == 0)
    def _():
        acc_ref[...] = jnp.zeros_like(acc_ref)

    # z = X[k_blk] @ W   (bf16 x bf16 -> f32 accumulation on the MXU)
    z = jnp.dot(x_ref[...], w_ref[...], preferred_element_type=jnp.float32)
    acc_ref[...] += jnp.dot(a_ref[...], z.astype(a_ref.dtype),
                            preferred_element_type=jnp.float32)

    @pl.when(k == pl.num_programs(1) - 1)
    def _():
        h = acc_ref[...] + b_ref[...]
        if apply_relu:
            h = jnp.maximum(h, 0.0)
        out_ref[...] = h.astype(out_ref.dtype)


def _gcn_layer(a_bf16, x_bf16, w_bf16, b_f32, *, apply_relu, tm, tk, out_dtype):
    n_pad = a_bf16.shape[0]
    c_in = x_bf16.shape[1]
    h_out = w_bf16.shape[1]
    grid = (n_pad // tm, n_pad // tk)

    flops = 2 * n_pad * n_pad * h_out + 2 * grid[0] * n_pad * c_in * h_out
    bytes_accessed = (a_bf16.size * 2 + x_bf16.size * 2 + w_bf16.size * 2
                      + b_f32.size * 4 + n_pad * h_out * 4)

    return pl.pallas_call(
        functools.partial(_gcn_layer_kernel, apply_relu=apply_relu),
        out_shape=jax.ShapeDtypeStruct((n_pad, h_out), out_dtype),
        grid_spec=pltpu.PrefetchScalarGridSpec(
            num_scalar_prefetch=0,
            grid=grid,
            in_specs=[
                pl.BlockSpec((tm, tk), lambda i, k: (i, k)),       # A tile
                pl.BlockSpec((tk, c_in), lambda i, k: (k, 0)),     # X tile
                pl.BlockSpec((c_in, h_out), lambda i, k: (0, 0)),  # W (resident)
                pl.BlockSpec((1, h_out), lambda i, k: (0, 0)),     # bias
            ],
            out_specs=pl.BlockSpec((tm, h_out), lambda i, k: (i, 0)),
            scratch_shapes=[pltpu.VMEM((tm, h_out), jnp.float32)],
        ),
        compiler_params=pltpu.CompilerParams(
            dimension_semantics=("parallel", "arbitrary")),
        cost_estimate=pl.CostEstimate(flops=flops, transcendentals=0,
                                      bytes_accessed=bytes_accessed),
    )(a_bf16, x_bf16, w_bf16, b_f32)


# ---------------------------------------------------------------------------
# Kernel 2: edge MLP with a real row gather.
#   grid over edge tiles; parents/children live in SMEM (scalar prefetch);
#   rows of h2 are copied into VMEM scratch blocks, then blocked matmuls.
# ---------------------------------------------------------------------------
def _edge_mlp_kernel(parents_ref, children_ref,
                     h2_ref, wm1a_ref, wm1b_ref, bm1_ref, wm2_ref, bm2_ref,
                     out_ref, ep_buf, ec_buf, *, te):
    base = pl.program_id(0) * te
    # Gather rows of h2 for this edge tile (unrolled; te is small & static).
    for r in range(te):
        p = parents_ref[base + r]
        c = children_ref[base + r]
        ep_buf[pl.ds(r, 1), :] = h2_ref[pl.ds(p, 1), :]
        ec_buf[pl.ds(r, 1), :] = h2_ref[pl.ds(c, 1), :]

    ep = ep_buf[...].astype(jnp.bfloat16)
    ec = ec_buf[...].astype(jnp.bfloat16)

    # concat([ep, ec], 1) @ Wm1  ==  ep @ Wm1[:H] + ec @ Wm1[H:]
    m = (jnp.dot(ep, wm1a_ref[...], preferred_element_type=jnp.float32)
         + jnp.dot(ec, wm1b_ref[...], preferred_element_type=jnp.float32)
         + bm1_ref[...])
    m = jnp.maximum(m, 0.0)

    out_ref[...] = (jnp.dot(m.astype(jnp.bfloat16), wm2_ref[...],
                            preferred_element_type=jnp.float32)
                    + bm2_ref[...])


def _edge_mlp(parents, children, h2_f32, wm1a, wm1b, bm1, wm2, bm2, *, te):
    e_pad = parents.shape[0]
    n_pad, h_pad = h2_f32.shape
    o_pad = wm2.shape[1]

    return pl.pallas_call(
        functools.partial(_edge_mlp_kernel, te=te),
        out_shape=jax.ShapeDtypeStruct((e_pad, o_pad), jnp.float32),
        grid_spec=pltpu.PrefetchScalarGridSpec(
            num_scalar_prefetch=2,            # parents, children -> SMEM
            grid=(e_pad // te,),
            in_specs=[
                pl.BlockSpec((n_pad, h_pad), lambda e, p, c: (0, 0)),  # h2
                pl.BlockSpec((h_pad, h_pad), lambda e, p, c: (0, 0)),  # wm1a
                pl.BlockSpec((h_pad, h_pad), lambda e, p, c: (0, 0)),  # wm1b
                pl.BlockSpec((1, h_pad), lambda e, p, c: (0, 0)),      # bm1
                pl.BlockSpec((h_pad, o_pad), lambda e, p, c: (0, 0)),  # wm2
                pl.BlockSpec((1, o_pad), lambda e, p, c: (0, 0)),      # bm2
            ],
            out_specs=pl.BlockSpec((te, o_pad), lambda e, p, c: (e, 0)),
            scratch_shapes=[pltpu.VMEM((te, h_pad), jnp.float32),
                            pltpu.VMEM((te, h_pad), jnp.float32)],
        ),
        compiler_params=pltpu.CompilerParams(
            dimension_semantics=("parallel",)),
    )(parents, children, h2_f32, wm1a, wm1b, bm1, wm2, bm2)


# ---------------------------------------------------------------------------
# Wrapper
# ---------------------------------------------------------------------------
def gcn_normalized_adjacency(edge_index, num_nodes):
    """Dense D^{-1/2} (A + I) D^{-1/2}, matching PyG GCNConv normalization."""
    src, dst = edge_index[0], edge_index[1]
    a = jnp.zeros((num_nodes, num_nodes), jnp.float32)
    a = a.at[dst, src].add(1.0)            # A[i, j] = 1 iff edge j -> i
    a = a + jnp.eye(num_nodes, dtype=jnp.float32)
    deg = jnp.sum(a, axis=1)
    dinv = jnp.where(deg > 0, 1.0 / jnp.sqrt(deg), 0.0)
    return dinv[:, None] * a * dinv[None, :]


def _pad2(w, rows, cols):
    out = jnp.zeros((rows, cols), w.dtype)
    return out.at[: w.shape[0], : w.shape[1]].set(w)


def edge_classifier_forward(x, edge_index, params):
    n, c_in = x.shape
    e = edge_index.shape[1]
    hidden = params["w1"].shape[1]
    out_c = params["wm2"].shape[1]

    # ---- padded sizes (lane-dense feature dims; 128-aligned node tiles) ----
    c_pad = _round_up(c_in, LANE)
    h_pad = _round_up(hidden, LANE)
    o_pad = _round_up(out_c, LANE)
    if n >= LANE:
        tn = LANE
        n_pad = _round_up(n, tn)
    else:
        n_pad = _round_up(n, SUBLANE)
        tn = n_pad
    te = 8
    e_pad = _round_up(e, te)

    # ---- dense normalized adjacency, zero-padded, bf16 for the MXU ----
    a_norm = gcn_normalized_adjacency(edge_index, n)
    a_bf16 = _pad2(a_norm, n_pad, n_pad).astype(jnp.bfloat16)
    x_bf16 = _pad2(x, n_pad, c_pad).astype(jnp.bfloat16)

    w1 = _pad2(params["w1"], c_pad, h_pad).astype(jnp.bfloat16)
    w2 = _pad2(params["w2"], h_pad, h_pad).astype(jnp.bfloat16)
    b1 = _pad2(params["b1"].reshape(1, -1), 1, h_pad)
    b2 = _pad2(params["b2"].reshape(1, -1), 1, h_pad)
    wm1a = _pad2(params["wm1"][:hidden, :], h_pad, h_pad).astype(jnp.bfloat16)
    wm1b = _pad2(params["wm1"][hidden:, :], h_pad, h_pad).astype(jnp.bfloat16)
    bm1 = _pad2(params["bm1"].reshape(1, -1), 1, h_pad)
    wm2 = _pad2(params["wm2"], h_pad, o_pad).astype(jnp.bfloat16)
    bm2 = _pad2(params["bm2"].reshape(1, -1), 1, o_pad)

    # ---- GCN layer 1 (ReLU) and layer 2; A streamed in (tn, tn) tiles ----
    h1 = _gcn_layer(a_bf16, x_bf16, w1, b1, apply_relu=True,
                    tm=tn, tk=tn, out_dtype=jnp.bfloat16)
    # dropout(p=0.5) in eval mode == identity
    h2 = _gcn_layer(a_bf16, h1, w2, b2, apply_relu=False,
                    tm=tn, tk=tn, out_dtype=jnp.float32)

    # ---- edge MLP with scalar-prefetched row gather ----
    parents = jnp.zeros((e_pad,), jnp.int32).at[:e].set(edge_index[0].astype(jnp.int32))
    children = jnp.zeros((e_pad,), jnp.int32).at[:e].set(edge_index[1].astype(jnp.int32))

    out_pad = _edge_mlp(parents, children, h2, wm1a, wm1b, bm1, wm2, bm2, te=te)
    return out_pad[:e, :out_c]


def reference_forward(x, edge_index, params):
    """Pure-JAX f32 reference (same math as the PyTorch module in eval mode)."""
    a_norm = gcn_normalized_adjacency(edge_index, x.shape[0])
    h1 = jnp.maximum(a_norm @ (x @ params["w1"]) + params["b1"], 0.0)
    h2 = a_norm @ (h1 @ params["w2"]) + params["b2"]
    parents, children = edge_index[0], edge_index[1]
    ef = jnp.concatenate([h2[parents], h2[children]], axis=1)
    m = jnp.maximum(ef @ params["wm1"] + params["bm1"], 0.0)
    return m @ params["wm2"] + params["bm2"]


def init_params(key, in_channels, hidden_channels, out_channels):
    ks = jax.random.split(key, 8)
    scale = 0.1
    return {
        "w1": scale * jax.random.normal(ks[0], (in_channels, hidden_channels), jnp.float32),
        "b1": scale * jax.random.normal(ks[1], (hidden_channels,), jnp.float32),
        "w2": scale * jax.random.normal(ks[2], (hidden_channels, hidden_channels), jnp.float32),
        "b2": scale * jax.random.normal(ks[3], (hidden_channels,), jnp.float32),
        "wm1": scale * jax.random.normal(ks[4], (2 * hidden_channels, hidden_channels), jnp.float32),
        "bm1": scale * jax.random.normal(ks[5], (hidden_channels,), jnp.float32),
        "wm2": scale * jax.random.normal(ks[6], (hidden_channels, out_channels), jnp.float32),
        "bm2": scale * jax.random.normal(ks[7], (out_channels,), jnp.float32),
    }


if __name__ == "__main__":
    key = jax.random.PRNGKey(0)
    k_x, k_p = jax.random.split(key)

    num_nodes = 8
    in_channels = 4
    hidden_channels = 32
    out_channels = 2

    x = jax.random.normal(k_x, (num_nodes, in_channels), jnp.float32)

    # Simple DAG-ish edge set, shape [2, E]
    edge_index = jnp.array(
        [[0, 0, 1, 1, 2, 3, 3, 4, 5, 6],
         [1, 2, 2, 3, 4, 4, 5, 6, 7, 7]], dtype=jnp.int32)

    params = init_params(k_p, in_channels, hidden_channels, out_channels)

    fwd = jax.jit(edge_classifier_forward)
    out = fwd(x, edge_index, params)
    out = jax.block_until_ready(out)

    ref = reference_forward(x, edge_index, params)
    assert out.shape == (edge_index.shape[1], out_channels)
    # Kernel uses bf16 matmul operands (f32 accumulation); compare to the f32
    # reference with a correspondingly relaxed tolerance.
    assert jnp.allclose(out, ref, atol=5e-2, rtol=5e-2), "mismatch vs JAX reference"

    print("KERNEL_OK")
</pallas_src>

<mosaic_0001>
module attributes {stable_mosaic.version = 11 : i64} {
  func.func @_gcn_layer_kernel(%arg0: i32, %arg1: i32, %arg2: memref<8x8xbf16, #tpu.memory_space<vmem>>, %arg3: memref<8x128xbf16, #tpu.memory_space<vmem>>, %arg4: memref<128x128xbf16, #tpu.memory_space<vmem>>, %arg5: memref<1x128xf32, #tpu.memory_space<vmem>>, %arg6: memref<8x128xbf16, #tpu.memory_space<vmem>>, %arg7: memref<8x128xf32, #tpu.memory_space<vmem>>) attributes {dimension_semantics = [#tpu.dimension_semantics<parallel>, #tpu.dimension_semantics<arbitrary>], iteration_bounds = array<i64: 1, 1>, scalar_prefetch = 0 : i64, scratch_operands = 1 : i64, tpu.core_type = #tpu.core_type<tc>, window_params = [{transform_indices = @transform_0, window_bounds = array<i64: 8, 8>}, {transform_indices = @transform_1, window_bounds = array<i64: 8, 128>}, {pipeline_mode = #tpu.pipeline_mode<synchronous>, transform_indices = @transform_2, window_bounds = array<i64: 128, 128>}, {pipeline_mode = #tpu.pipeline_mode<synchronous>, transform_indices = @transform_3, window_bounds = array<i64: 1, 128>}, {transform_indices = @transform_4, window_bounds = array<i64: 8, 128>}]} {
    %c0_i32 = arith.constant 0 : i32
    %0 = arith.cmpi eq, %arg1, %c0_i32 : i32
    %1 = arith.extui %0 : i1 to i32
    %c0_i32_0 = arith.constant 0 : i32
    %2 = arith.cmpi ne, %1, %c0_i32_0 : i32
    scf.if %2 {
      %cst_13 = arith.constant 0.000000e+00 : f32
      %15 = vector.broadcast %cst_13 : f32 to vector<8x128xf32>
      %c0_14 = arith.constant 0 : index
      %c0_15 = arith.constant 0 : index
      %16 = vector.load %arg7[%c0_14, %c0_15] : memref<8x128xf32, #tpu.memory_space<vmem>>, vector<8x128xf32>
      tpu.vector_store %arg7[%c0_14, %c0_15], %15 {strides = array<i32>} : memref<8x128xf32, #tpu.memory_space<vmem>>, vector<8x128xf32>,
    } else {
    }
    %c0 = arith.constant 0 : index
    %c0_1 = arith.constant 0 : index
    %3 = vector.load %arg3[%c0, %c0_1] : memref<8x128xbf16, #tpu.memory_space<vmem>>, vector<8x128xbf16>
    %c0_2 = arith.constant 0 : index
    %c0_3 = arith.constant 0 : index
    %4 = vector.load %arg4[%c0_2, %c0_3] : memref<128x128xbf16, #tpu.memory_space<vmem>>, vector<128x128xbf16>
    %cst = arith.constant dense<0.000000e+00> : vector<8x128xf32>
    %5 = tpu.matmul %3, %4, %cst {dimension_numbers = #tpu.dot_dimension_numbers<[1], [0], [0], [1], [0, 0, 1, 1], [], []>} : vector<8x128xbf16>, vector<128x128xbf16>, vector<8x128xf32> -> vector<8x128xf32>
    %c0_4 = arith.constant 0 : index
    %c0_5 = arith.constant 0 : index
    %6 = vector.load %arg7[%c0_4, %c0_5] : memref<8x128xf32, #tpu.memory_space<vmem>>, vector<8x128xf32>
    %c0_6 = arith.constant 0 : index
    %c0_7 = arith.constant 0 : index
    %7 = vector.load %arg2[%c0_6, %c0_7] : memref<8x8xbf16, #tpu.memory_space<vmem>>, vector<8x8xbf16>
    %8 = arith.truncf %5 : vector<8x128xf32> to vector<8x128xbf16>
    %cst_8 = arith.constant dense<0.000000e+00> : vector<8x128xf32>
    %9 = tpu.matmul %7, %8, %cst_8 {dimension_numbers = #tpu.dot_dimension_numbers<[1], [0], [0], [1], [0, 0, 1, 1], [], []>} : vector<8x8xbf16>, vector<8x128xbf16>, vector<8x128xf32> -> vector<8x128xf32>
    %10 = arith.addf %6, %9 : vector<8x128xf32>
    %c0_9 = arith.constant 0 : index
    %c0_10 = arith.constant 0 : index
    %11 = vector.load %arg7[%c0_9, %c0_10] : memref<8x128xf32, #tpu.memory_space<vmem>>, vector<8x128xf32>
    tpu.vector_store %arg7[%c0_9, %c0_10], %10 {strides = array<i32>} : memref<8x128xf32, #tpu.memory_space<vmem>>, vector<8x128xf32>,
    %c0_i32_11 = arith.constant 0 : i32
    %12 = arith.cmpi eq, %arg1, %c0_i32_11 : i32
    %13 = arith.extui %12 : i1 to i32
    %c0_i32_12 = arith.constant 0 : i32
    %14 = arith.cmpi ne, %13, %c0_i32_12 : i32
    scf.if %14 {
      %c0_13 = arith.constant 0 : index
      %c0_14 = arith.constant 0 : index
      %15 = vector.load %arg7[%c0_13, %c0_14] : memref<8x128xf32, #tpu.memory_space<vmem>>, vector<8x128xf32>
      %c0_15 = arith.constant 0 : index
      %c0_16 = arith.constant 0 : index
      %16 = vector.load %arg5[%c0_15, %c0_16] : memref<1x128xf32, #tpu.memory_space<vmem>>, vector<1x128xf32>
      %17 = vector.broadcast %16 : vector<1x128xf32> to vector<8x128xf32>
      %18 = arith.addf %15, %17 : vector<8x128xf32>
      %cst_17 = arith.constant 0.000000e+00 : f32
      %19 = vector.broadcast %cst_17 : f32 to vector<8x128xf32>
      %20 = arith.maximumf %18, %19 : vector<8x128xf32>
      %21 = arith.truncf %20 : vector<8x128xf32> to vector<8x128xbf16>
      %c0_18 = arith.constant 0 : index
      %c0_19 = arith.constant 0 : index
      %22 = vector.load %arg6[%c0_18, %c0_19] : memref<8x128xbf16, #tpu.memory_space<vmem>>, vector<8x128xbf16>
      tpu.vector_store %arg6[%c0_18, %c0_19], %21 {strides = array<i32>} : memref<8x128xbf16, #tpu.memory_space<vmem>>, vector<8x128xbf16>,
    } else {
    }
    return
  }
  func.func @transform_0(%arg0: i32, %arg1: i32) -> (i32, i32) {
    %c0_i32 = arith.constant 0 : i32
    return %arg0, %arg1 : i32, i32
  }
  func.func @transform_1(%arg0: i32, %arg1: i32) -> (i32, i32) {
    %c0_i32 = arith.constant 0 : i32
    %c0_i32_0 = arith.constant 0 : i32
    return %arg1, %c0_i32 : i32, i32
  }
  func.func @transform_2(%arg0: i32, %arg1: i32) -> (i32, i32) {
    %c0_i32 = arith.constant 0 : i32
    %c0_i32_0 = arith.constant 0 : i32
    %c0_i32_1 = arith.constant 0 : i32
    return %c0_i32, %c0_i32_0 : i32, i32
  }
  func.func @transform_3(%arg0: i32, %arg1: i32) -> (i32, i32) {
    %c0_i32 = arith.constant 0 : i32
    %c0_i32_0 = arith.constant 0 : i32
    %c0_i32_1 = arith.constant 0 : i32
    return %c0_i32, %c0_i32_0 : i32, i32
  }
  func.func @transform_4(%arg0: i32, %arg1: i32) -> (i32, i32) {
    %c0_i32 = arith.constant 0 : i32
    %c0_i32_0 = arith.constant 0 : i32
    return %arg0, %c0_i32 : i32, i32
  }
}

module attributes {stable_mosaic.version = 11 : i64} {
  func.func @_edge_mlp_kernel(%arg0: i32, %arg1: memref<16xi32, #tpu.memory_space<smem>>, %arg2: memref<16xi32, #tpu.memory_space<smem>>, %arg3: memref<8x128xf32, #tpu.memory_space<vmem>>, %arg4: memref<128x128xbf16, #tpu.memory_space<vmem>>, %arg5: memref<128x128xbf16, #tpu.memory_space<vmem>>, %arg6: memref<1x128xf32, #tpu.memory_space<vmem>>, %arg7: memref<128x128xbf16, #tpu.memory_space<vmem>>, %arg8: memref<1x128xf32, #tpu.memory_space<vmem>>, %arg9: memref<8x128xf32, #tpu.memory_space<vmem>>, %arg10: memref<8x128xf32, #tpu.memory_space<vmem>>, %arg11: memref<8x128xf32, #tpu.memory_space<vmem>>) attributes {dimension_semantics = [#tpu.dimension_semantics<parallel>], iteration_bounds = array<i64: 2>, scalar_prefetch = 2 : i64, scratch_operands = 2 : i64, tpu.core_type = #tpu.core_type<tc>, window_params = [{pipeline_mode = #tpu.pipeline_mode<synchronous>, transform_indices = @transform_0, window_bounds = array<i64: 8, 128>}, {pipeline_mode = #tpu.pipeline_mode<synchronous>, transform_indices = @transform_1, window_bounds = array<i64: 128, 128>}, {pipeline_mode = #tpu.pipeline_mode<synchronous>, transform_indices = @transform_2, window_bounds = array<i64: 128, 128>}, {pipeline_mode = #tpu.pipeline_mode<synchronous>, transform_indices = @transform_3, window_bounds = array<i64: 1, 128>}, {pipeline_mode = #tpu.pipeline_mode<synchronous>, transform_indices = @transform_4, window_bounds = array<i64: 128, 128>}, {pipeline_mode = #tpu.pipeline_mode<synchronous>, transform_indices = @transform_5, window_bounds = array<i64: 1, 128>}, {transform_indices = @transform_6, window_bounds = array<i64: 8, 128>}]} {
    %c8_i32 = arith.constant 8 : i32
    %0 = arith.muli %arg0, %c8_i32 : i32
    %c0_i32 = arith.constant 0 : i32
    %1 = arith.addi %0, %c0_i32 : i32
    %2 = arith.index_cast %1 : i32 to index
    %3 = memref.load %arg1[%2] : memref<16xi32, #tpu.memory_space<smem>>
    %c0_i32_0 = arith.constant 0 : i32
    %4 = arith.addi %0, %c0_i32_0 : i32
    %5 = arith.index_cast %4 : i32 to index
    %6 = memref.load %arg2[%5] : memref<16xi32, #tpu.memory_space<smem>>
    %7 = arith.index_cast %3 : i32 to index
    %c0 = arith.constant 0 : index
    %8 = vector.load %arg3[%7, %c0] : memref<8x128xf32, #tpu.memory_space<vmem>>, vector<1x128xf32>
    %c0_1 = arith.constant 0 : index
    %c0_2 = arith.constant 0 : index
    %9 = vector.load %arg10[%c0_1, %c0_2] : memref<8x128xf32, #tpu.memory_space<vmem>>, vector<1x128xf32>
    tpu.vector_store %arg10[%c0_1, %c0_2], %8 {strides = array<i32>} : memref<8x128xf32, #tpu.memory_space<vmem>>, vector<1x128xf32>,
    %10 = arith.index_cast %6 : i32 to index
    %c0_3 = arith.constant 0 : index
    %11 = vector.load %arg3[%10, %c0_3] : memref<8x128xf32, #tpu.memory_space<vmem>>, vector<1x128xf32>
    %c0_4 = arith.constant 0 : index
    %c0_5 = arith.constant 0 : index
    %12 = vector.load %arg11[%c0_4, %c0_5] : memref<8x128xf32, #tpu.memory_space<vmem>>, vector<1x128xf32>
    tpu.vector_store %arg11[%c0_4, %c0_5], %11 {strides = array<i32>} : memref<8x128xf32, #tpu.memory_space<vmem>>, vector<1x128xf32>,
    %c1_i32 = arith.constant 1 : i32
    %13 = arith.addi %0, %c1_i32 : i32
    %14 = arith.index_cast %13 : i32 to index
    %15 = memref.load %arg1[%14] : memref<16xi32, #tpu.memory_space<smem>>
    %c1_i32_6 = arith.constant 1 : i32
    %16 = arith.addi %0, %c1_i32_6 : i32
    %17 = arith.index_cast %16 : i32 to index
    %18 = memref.load %arg2[%17] : memref<16xi32, #tpu.memory_space<smem>>
    %19 = arith.index_cast %15 : i32 to index
    %c0_7 = arith.constant 0 : index
    %20 = vector.load %arg3[%19, %c0_7] : memref<8x128xf32, #tpu.memory_space<vmem>>, vector<1x128xf32>
    %c1 = arith.constant 1 : index
    %c0_8 = arith.constant 0 : index
    %21 = vector.load %arg10[%c1, %c0_8] : memref<8x128xf32, #tpu.memory_space<vmem>>, vector<1x128xf32>
    tpu.vector_store %arg10[%c1, %c0_8], %20 {strides = array<i32>} : memref<8x128xf32, #tpu.memory_space<vmem>>, vector<1x128xf32>,
    %22 = arith.index_cast %18 : i32 to index
    %c0_9 = arith.constant 0 : index
    %23 = vector.load %arg3[%22, %c0_9] : memref<8x128xf32, #tpu.memory_space<vmem>>, vector<1x128xf32>
    %c1_10 = arith.constant 1 : index
    %c0_11 = arith.constant 0 : index
    %24 = vector.load %arg11[%c1_10, %c0_11] : memref<8x128xf32, #tpu.memory_space<vmem>>, vector<1x128xf32>
    tpu.vector_store %arg11[%c1_10, %c0_11], %23 {strides = array<i32>} : memref<8x128xf32, #tpu.memory_space<vmem>>, vector<1x128xf32>,
    %c2_i32 = arith.constant 2 : i32
    %25 = arith.addi %0, %c2_i32 : i32
    %26 = arith.index_cast %25 : i32 to index
    %27 = memref.load %arg1[%26] : memref<16xi32, #tpu.memory_space<smem>>
    %c2_i32_12 = arith.constant 2 : i32
    %28 = arith.addi %0, %c2_i32_12 : i32
    %29 = arith.index_cast %28 : i32 to index
    %30 = memref.load %arg2[%29] : memref<16xi32, #tpu.memory_space<smem>>
    %31 = arith.index_cast %27 : i32 to index
    %c0_13 = arith.constant 0 : index
    %32 = vector.load %arg3[%31, %c0_13] : memref<8x128xf32, #tpu.memory_space<vmem>>, vector<1x128xf32>
    %c2 = arith.constant 2 : index
    %c0_14 = arith.constant 0 : index
    %33 = vector.load %arg10[%c2, %c0_14] : memref<8x128xf32, #tpu.memory_space<vmem>>, vector<1x128xf32>
    tpu.vector_store %arg10[%c2, %c0_14], %32 {strides = array<i32>} : memref<8x128xf32, #tpu.memory_space<vmem>>, vector<1x128xf32>,
    %34 = arith.index_cast %30 : i32 to index
    %c0_15 = arith.constant 0 : index
    %35 = vector.load %arg3[%34, %c0_15] : memref<8x128xf32, #tpu.memory_space<vmem>>, vector<1x128xf32>
    %c2_16 = arith.constant 2 : index
    %c0_17 = arith.constant 0 : index
    %36 = vector.load %arg11[%c2_16, %c0_17] : memref<8x128xf32, #tpu.memory_space<vmem>>, vector<1x128xf32>
    tpu.vector_store %arg11[%c2_16, %c0_17], %35 {strides = array<i32>} : memref<8x128xf32, #tpu.memory_space<vmem>>, vector<1x128xf32>,
    %c3_i32 = arith.constant 3 : i32
    %37 = arith.addi %0, %c3_i32 : i32
    %38 = arith.index_cast %37 : i32 to index
    %39 = memref.load %arg1[%38] : memref<16xi32, #tpu.memory_space<smem>>
    %c3_i32_18 = arith.constant 3 : i32
    %40 = arith.addi %0, %c3_i32_18 : i32
    %41 = arith.index_cast %40 : i32 to index
    %42 = memref.load %arg2[%41] : memref<16xi32, #tpu.memory_space<smem>>
    %43 = arith.index_cast %39 : i32 to index
    %c0_19 = arith.constant 0 : index
    %44 = vector.load %arg3[%43, %c0_19] : memref<8x128xf32, #tpu.memory_space<vmem>>, vector<1x128xf32>
    %c3 = arith.constant 3 : index
    %c0_20 = arith.constant 0 : index
    %45 = vector.load %arg10[%c3, %c0_20] : memref<8x128xf32, #tpu.memory_space<vmem>>, vector<1x128xf32>
    tpu.vector_store %arg10[%c3, %c0_20], %44 {strides = array<i32>} : memref<8x128xf32, #tpu.memory_space<vmem>>, vector<1x128xf32>,
    %46 = arith.index_cast %42 : i32 to index
    %c0_21 = arith.constant 0 : index
    %47 = vector.load %arg3[%46, %c0_21] : memref<8x128xf32, #tpu.memory_space<vmem>>, vector<1x128xf32>
    %c3_22 = arith.constant 3 : index
    %c0_23 = arith.constant 0 : index
    %48 = vector.load %arg11[%c3_22, %c0_23] : memref<8x128xf32, #tpu.memory_space<vmem>>, vector<1x128xf32>
    tpu.vector_store %arg11[%c3_22, %c0_23], %47 {strides = array<i32>} : memref<8x128xf32, #tpu.memory_space<vmem>>, vector<1x128xf32>,
    %c4_i32 = arith.constant 4 : i32
    %49 = arith.addi %0, %c4_i32 : i32
    %50 = arith.index_cast %49 : i32 to index
    %51 = memref.load %arg1[%50] : memref<16xi32, #tpu.memory_space<smem>>
    %c4_i32_24 = arith.constant 4 : i32
    %52 = arith.addi %0, %c4_i32_24 : i32
    %53 = arith.index_cast %52 : i32 to index
    %54 = memref.load %arg2[%53] : memref<16xi32, #tpu.memory_space<smem>>
    %55 = arith.index_cast %51 : i32 to index
    %c0_25 = arith.constant 0 : index
    %56 = vector.load %arg3[%55, %c0_25] : memref<8x128xf32, #tpu.memory_space<vmem>>, vector<1x128xf32>
    %c4 = arith.constant 4 : index
    %c0_26 = arith.constant 0 : index
    %57 = vector.load %arg10[%c4, %c0_26] : memref<8x128xf32, #tpu.memory_space<vmem>>, vector<1x128xf32>
    tpu.vector_store %arg10[%c4, %c0_26], %56 {strides = array<i32>} : memref<8x128xf32, #tpu.memory_space<vmem>>, vector<1x128xf32>,
    %58 = arith.index_cast %54 : i32 to index
    %c0_27 = arith.constant 0 : index
    %59 = vector.load %arg3[%58, %c0_27] : memref<8x128xf32, #tpu.memory_space<vmem>>, vector<1x128xf32>
    %c4_28 = arith.constant 4 : index
    %c0_29 = arith.constant 0 : index
    %60 = vector.load %arg11[%c4_28, %c0_29] : memref<8x128xf32, #tpu.memory_space<vmem>>, vector<1x128xf32>
    tpu.vector_store %arg11[%c4_28, %c0_29], %59 {strides = array<i32>} : memref<8x128xf32, #tpu.memory_space<vmem>>, vector<1x128xf32>,
    %c5_i32 = arith.constant 5 : i32
    %61 = arith.addi %0, %c5_i32 : i32
    %62 = arith.index_cast %61 : i32 to index
    %63 = memref.load %arg1[%62] : memref<16xi32, #tpu.memory_space<smem>>
    %c5_i32_30 = arith.constant 5 : i32
    %64 = arith.addi %0, %c5_i32_30 : i32
    %65 = arith.index_cast %64 : i32 to index
    %66 = memref.load %arg2[%65] : memref<16xi32, #tpu.memory_space<smem>>
    %67 = arith.index_cast %63 : i32 to index
    %c0_31 = arith.constant 0 : index
    %68 = vector.load %arg3[%67, %c0_31] : memref<8x128xf32, #tpu.memory_space<vmem>>, vector<1x128xf32>
    %c5 = arith.constant 5 : index
    %c0_32 = arith.constant 0 : index
    %69 = vector.load %arg10[%c5, %c0_32] : memref<8x128xf32, #tpu.memory_space<vmem>>, vector<1x128xf32>
    tpu.vector_store %arg10[%c5, %c0_32], %68 {strides = array<i32>} : memref<8x128xf32, #tpu.memory_space<vmem>>, vector<1x128xf32>,
    %70 = arith.index_cast %66 : i32 to index
    %c0_33 = arith.constant 0 : index
    %71 = vector.load %arg3[%70, %c0_33] : memref<8x128xf32, #tpu.memory_space<vmem>>, vector<1x128xf32>
    %c5_34 = arith.constant 5 : index
    %c0_35 = arith.constant 0 : index
    %72 = vector.load %arg11[%c5_34, %c0_35] : memref<8x128xf32, #tpu.memory_space<vmem>>, vector<1x128xf32>
    tpu.vector_store %arg11[%c5_34, %c0_35], %71 {strides = array<i32>} : memref<8x128xf32, #tpu.memory_space<vmem>>, vector<1x128xf32>,
    %c6_i32 = arith.constant 6 : i32
    %73 = arith.addi %0, %c6_i32 : i32
    %74 = arith.index_cast %73 : i32 to index
    %75 = memref.load %arg1[%74] : memref<16xi32, #tpu.memory_space<smem>>
    %c6_i32_36 = arith.constant 6 : i32
    %76 = arith.addi %0, %c6_i32_36 : i32
    %77 = arith.index_cast %76 : i32 to index
    %78 = memref.load %arg2[%77] : memref<16xi32, #tpu.memory_space<smem>>
    %79 = arith.index_cast %75 : i32 to index
    %c0_37 = arith.constant 0 : index
    %80 = vector.load %arg3[%79, %c0_37] : memref<8x128xf32, #tpu.memory_space<vmem>>, vector<1x128xf32>
    %c6 = arith.constant 6 : index
    %c0_38 = arith.constant 0 : index
    %81 = vector.load %arg10[%c6, %c0_38] : memref<8x128xf32, #tpu.memory_space<vmem>>, vector<1x128xf32>
    tpu.vector_store %arg10[%c6, %c0_38], %80 {strides = array<i32>} : memref<8x128xf32, #tpu.memory_space<vmem>>, vector<1x128xf32>,
    %82 = arith.index_cast %78 : i32 to index
    %c0_39 = arith.constant 0 : index
    %83 = vector.load %arg3[%82, %c0_39] : memref<8x128xf32, #tpu.memory_space<vmem>>, vector<1x128xf32>
    %c6_40 = arith.constant 6 : index
    %c0_41 = arith.constant 0 : index
    %84 = vector.load %arg11[%c6_40, %c0_41] : memref<8x128xf32, #tpu.memory_space<vmem>>, vector<1x128xf32>
    tpu.vector_store %arg11[%c6_40, %c0_41], %83 {strides = array<i32>} : memref<8x128xf32, #tpu.memory_space<vmem>>, vector<1x128xf32>,
    %c7_i32 = arith.constant 7 : i32
    %85 = arith.addi %0, %c7_i32 : i32
    %86 = arith.index_cast %85 : i32 to index
    %87 = memref.load %arg1[%86] : memref<16xi32, #tpu.memory_space<smem>>
    %c7_i32_42 = arith.constant 7 : i32
    %88 = arith.addi %0, %c7_i32_42 : i32
    %89 = arith.index_cast %88 : i32 to index
    %90 = memref.load %arg2[%89] : memref<16xi32, #tpu.memory_space<smem>>
    %91 = arith.index_cast %87 : i32 to index
    %c0_43 = arith.constant 0 : index
    %92 = vector.load %arg3[%91, %c0_43] : memref<8x128xf32, #tpu.memory_space<vmem>>, vector<1x128xf32>
    %c7 = arith.constant 7 : index
    %c0_44 = arith.constant 0 : index
    %93 = vector.load %arg10[%c7, %c0_44] : memref<8x128xf32, #tpu.memory_space<vmem>>, vector<1x128xf32>
    tpu.vector_store %arg10[%c7, %c0_44], %92 {strides = array<i32>} : memref<8x128xf32, #tpu.memory_space<vmem>>, vector<1x128xf32>,
    %94 = arith.index_cast %90 : i32 to index
    %c0_45 = arith.constant 0 : index
    %95 = vector.load %arg3[%94, %c0_45] : memref<8x128xf32, #tpu.memory_space<vmem>>, vector<1x128xf32>
    %c7_46 = arith.constant 7 : index
    %c0_47 = arith.constant 0 : index
    %96 = vector.load %arg11[%c7_46, %c0_47] : memref<8x128xf32, #tpu.memory_space<vmem>>, vector<1x128xf32>
    tpu.vector_store %arg11[%c7_46, %c0_47], %95 {strides = array<i32>} : memref<8x128xf32, #tpu.memory_space<vmem>>, vector<1x128xf32>,
    %c0_48 = arith.constant 0 : index
    %c0_49 = arith.constant 0 : index
    %97 = vector.load %arg10[%c0_48, %c0_49] : memref<8x128xf32, #tpu.memory_space<vmem>>, vector<8x128xf32>
    %98 = arith.truncf %97 : vector<8x128xf32> to vector<8x128xbf16>
    %c0_50 = arith.constant 0 : index
    %c0_51 = arith.constant 0 : index
    %99 = vector.load %arg11[%c0_50, %c0_51] : memref<8x128xf32, #tpu.memory_space<vmem>>, vector<8x128xf32>
    %100 = arith.truncf %99 : vector<8x128xf32> to vector<8x128xbf16>
    %c0_52 = arith.constant 0 : index
    %c0_53 = arith.constant 0 : index
    %101 = vector.load %arg4[%c0_52, %c0_53] : memref<128x128xbf16, #tpu.memory_space<vmem>>, vector<128x128xbf16>
    %cst = arith.constant dense<0.000000e+00> : vector<8x128xf32>
    %102 = tpu.matmul %98, %101, %cst {dimension_numbers = #tpu.dot_dimension_numbers<[1], [0], [0], [1], [0, 0, 1, 1], [], []>} : vector<8x128xbf16>, vector<128x128xbf16>, vector<8x128xf32> -> vector<8x128xf32>
    %c0_54 = arith.constant 0 : index
    %c0_55 = arith.constant 0 : index
    %103 = vector.load %arg5[%c0_54, %c0_55] : memref<128x128xbf16, #tpu.memory_space<vmem>>, vector<128x128xbf16>
    %cst_56 = arith.constant dense<0.000000e+00> : vector<8x128xf32>
    %104 = tpu.matmul %100, %103, %cst_56 {dimension_numbers = #tpu.dot_dimension_numbers<[1], [0], [0], [1], [0, 0, 1, 1], [], []>} : vector<8x128xbf16>, vector<128x128xbf16>, vector<8x128xf32> -> vector<8x128xf32>
    %105 = arith.addf %102, %104 : vector<8x128xf32>
    %c0_57 = arith.constant 0 : index
    %c0_58 = arith.constant 0 : index
    %106 = vector.load %arg6[%c0_57, %c0_58] : memref<1x128xf32, #tpu.memory_space<vmem>>, vector<1x128xf32>
    %107 = vector.broadcast %106 : vector<1x128xf32> to vector<8x128xf32>
    %108 = arith.addf %105, %107 : vector<8x128xf32>
    %cst_59 = arith.constant 0.000000e+00 : f32
    %109 = vector.broadcast %cst_59 : f32 to vector<8x128xf32>
    %110 = arith.maximumf %108, %109 : vector<8x128xf32>
    %111 = arith.truncf %110 : vector<8x128xf32> to vector<8x128xbf16>
    %c0_60 = arith.constant 0 : index
    %c0_61 = arith.constant 0 : index
    %112 = vector.load %arg7[%c0_60, %c0_61] : memref<128x128xbf16, #tpu.memory_space<vmem>>, vector<128x128xbf16>
    %cst_62 = arith.constant dense<0.000000e+00> : vector<8x128xf32>
    %113 = tpu.matmul %111, %112, %cst_62 {dimension_numbers = #tpu.dot_dimension_numbers<[1], [0], [0], [1], [0, 0, 1, 1], [], []>} : vector<8x128xbf16>, vector<128x128xbf16>, vector<8x128xf32> -> vector<8x128xf32>
    %c0_63 = arith.constant 0 : index
    %c0_64 = arith.constant 0 : index
    %114 = vector.load %arg8[%c0_63, %c0_64] : memref<1x128xf32, #tpu.memory_space<vmem>>, vector<1x128xf32>
    %115 = vector.broadcast %114 : vector<1x128xf32> to vector<8x128xf32>
    %116 = arith.addf %113, %115 : vector<8x128xf32>
    %c0_65 = arith.constant 0 : index
    %c0_66 = arith.constant 0 : index
    %117 = vector.load %arg9[%c0_65, %c0_66] : memref<8x128xf32, #tpu.memory_space<vmem>>, vector<8x128xf32>
    tpu.vector_store %arg9[%c0_65, %c0_66], %116 {strides = array<i32>} : memref<8x128xf32, #tpu.memory_space<vmem>>, vector<8x128xf32>,
    return
  }
  func.func @transform_0(%arg0: i32, %arg1: memref<16xi32, #tpu.memory_space<smem>>, %arg2: memref<16xi32, #tpu.memory_space<smem>>) -> (i32, i32) {
    %c0_i32 = arith.constant 0 : i32
    %c0_i32_0 = arith.constant 0 : i32
    %c0_i32_1 = arith.constant 0 : i32
    return %c0_i32, %c0_i32_0 : i32, i32
  }
  func.func @transform_1(%arg0: i32, %arg1: memref<16xi32, #tpu.memory_space<smem>>, %arg2: memref<16xi32, #tpu.memory_space<smem>>) -> (i32, i32) {
    %c0_i32 = arith.constant 0 : i32
    %c0_i32_0 = arith.constant 0 : i32
    %c0_i32_1 = arith.constant 0 : i32
    return %c0_i32, %c0_i32_0 : i32, i32
  }
  func.func @transform_2(%arg0: i32, %arg1: memref<16xi32, #tpu.memory_space<smem>>, %arg2: memref<16xi32, #tpu.memory_space<smem>>) -> (i32, i32) {
    %c0_i32 = arith.constant 0 : i32
    %c0_i32_0 = arith.constant 0 : i32
    %c0_i32_1 = arith.constant 0 : i32
    return %c0_i32, %c0_i32_0 : i32, i32
  }
  func.func @transform_3(%arg0: i32, %arg1: memref<16xi32, #tpu.memory_space<smem>>, %arg2: memref<16xi32, #tpu.memory_space<smem>>) -> (i32, i32) {
    %c0_i32 = arith.constant 0 : i32
    %c0_i32_0 = arith.constant 0 : i32
    %c0_i32_1 = arith.constant 0 : i32
    return %c0_i32, %c0_i32_0 : i32, i32
  }
  func.func @transform_4(%arg0: i32, %arg1: memref<16xi32, #tpu.memory_space<smem>>, %arg2: memref<16xi32, #tpu.memory_space<smem>>) -> (i32, i32) {
    %c0_i32 = arith.constant 0 : i32
    %c0_i32_0 = arith.constant 0 : i32
    %c0_i32_1 = arith.constant 0 : i32
    return %c0_i32, %c0_i32_0 : i32, i32
  }
  func.func @transform_5(%arg0: i32, %arg1: memref<16xi32, #tpu.memory_space<smem>>, %arg2: memref<16xi32, #tpu.memory_space<smem>>) -> (i32, i32) {
    %c0_i32 = arith.constant 0 : i32
    %c0_i32_0 = arith.constant 0 : i32
    %c0_i32_1 = arith.constant 0 : i32
    return %c0_i32, %c0_i32_0 : i32, i32
  }
  func.func @transform_6(%arg0: i32, %arg1: memref<16xi32, #tpu.memory_space<smem>>, %arg2: memref<16xi32, #tpu.memory_space<smem>>) -> (i32, i32) {
    %c0_i32 = arith.constant 0 : i32
    %c0_i32_0 = arith.constant 0 : i32
    return %arg0, %c0_i32 : i32, i32
  }
}

module attributes {stable_mosaic.version = 11 : i64} {
  func.func @_gcn_layer_kernel(%arg0: i32, %arg1: i32, %arg2: memref<8x8xbf16, #tpu.memory_space<vmem>>, %arg3: memref<8x128xbf16, #tpu.memory_space<vmem>>, %arg4: memref<128x128xbf16, #tpu.memory_space<vmem>>, %arg5: memref<1x128xf32, #tpu.memory_space<vmem>>, %arg6: memref<8x128xf32, #tpu.memory_space<vmem>>, %arg7: memref<8x128xf32, #tpu.memory_space<vmem>>) attributes {dimension_semantics = [#tpu.dimension_semantics<parallel>, #tpu.dimension_semantics<arbitrary>], iteration_bounds = array<i64: 1, 1>, scalar_prefetch = 0 : i64, scratch_operands = 1 : i64, tpu.core_type = #tpu.core_type<tc>, window_params = [{transform_indices = @transform_0, window_bounds = array<i64: 8, 8>}, {transform_indices = @transform_1, window_bounds = array<i64: 8, 128>}, {pipeline_mode = #tpu.pipeline_mode<synchronous>, transform_indices = @transform_2, window_bounds = array<i64: 128, 128>}, {pipeline_mode = #tpu.pipeline_mode<synchronous>, transform_indices = @transform_3, window_bounds = array<i64: 1, 128>}, {transform_indices = @transform_4, window_bounds = array<i64: 8, 128>}]} {
    %c0_i32 = arith.constant 0 : i32
    %0 = arith.cmpi eq, %arg1, %c0_i32 : i32
    %1 = arith.extui %0 : i1 to i32
    %c0_i32_0 = arith.constant 0 : i32
    %2 = arith.cmpi ne, %1, %c0_i32_0 : i32
    scf.if %2 {
      %cst_13 = arith.constant 0.000000e+00 : f32
      %15 = vector.broadcast %cst_13 : f32 to vector<8x128xf32>
      %c0_14 = arith.constant 0 : index
      %c0_15 = arith.constant 0 : index
      %16 = vector.load %arg7[%c0_14, %c0_15] : memref<8x128xf32, #tpu.memory_space<vmem>>, vector<8x128xf32>
      tpu.vector_store %arg7[%c0_14, %c0_15], %15 {strides = array<i32>} : memref<8x128xf32, #tpu.memory_space<vmem>>, vector<8x128xf32>,
    } else {
    }
    %c0 = arith.constant 0 : index
    %c0_1 = arith.constant 0 : index
    %3 = vector.load %arg3[%c0, %c0_1] : memref<8x128xbf16, #tpu.memory_space<vmem>>, vector<8x128xbf16>
    %c0_2 = arith.constant 0 : index
    %c0_3 = arith.constant 0 : index
    %4 = vector.load %arg4[%c0_2, %c0_3] : memref<128x128xbf16, #tpu.memory_space<vmem>>, vector<128x128xbf16>
    %cst = arith.constant dense<0.000000e+00> : vector<8x128xf32>
    %5 = tpu.matmul %3, %4, %cst {dimension_numbers = #tpu.dot_dimension_numbers<[1], [0], [0], [1], [0, 0, 1, 1], [], []>} : vector<8x128xbf16>, vector<128x128xbf16>, vector<8x128xf32> -> vector<8x128xf32>
    %c0_4 = arith.constant 0 : index
    %c0_5 = arith.constant 0 : index
    %6 = vector.load %arg7[%c0_4, %c0_5] : memref<8x128xf32, #tpu.memory_space<vmem>>, vector<8x128xf32>
    %c0_6 = arith.constant 0 : index
    %c0_7 = arith.constant 0 : index
    %7 = vector.load %arg2[%c0_6, %c0_7] : memref<8x8xbf16, #tpu.memory_space<vmem>>, vector<8x8xbf16>
    %8 = arith.truncf %5 : vector<8x128xf32> to vector<8x128xbf16>
    %cst_8 = arith.constant dense<0.000000e+00> : vector<8x128xf32>
    %9 = tpu.matmul %7, %8, %cst_8 {dimension_numbers = #tpu.dot_dimension_numbers<[1], [0], [0], [1], [0, 0, 1, 1], [], []>} : vector<8x8xbf16>, vector<8x128xbf16>, vector<8x128xf32> -> vector<8x128xf32>
    %10 = arith.addf %6, %9 : vector<8x128xf32>
    %c0_9 = arith.constant 0 : index
    %c0_10 = arith.constant 0 : index
    %11 = vector.load %arg7[%c0_9, %c0_10] : memref<8x128xf32, #tpu.memory_space<vmem>>, vector<8x128xf32>
    tpu.vector_store %arg7[%c0_9, %c0_10], %10 {strides = array<i32>} : memref<8x128xf32, #tpu.memory_space<vmem>>, vector<8x128xf32>,
    %c0_i32_11 = arith.constant 0 : i32
    %12 = arith.cmpi eq, %arg1, %c0_i32_11 : i32
    %13 = arith.extui %12 : i1 to i32
    %c0_i32_12 = arith.constant 0 : i32
    %14 = arith.cmpi ne, %13, %c0_i32_12 : i32
    scf.if %14 {
      %c0_13 = arith.constant 0 : index
      %c0_14 = arith.constant 0 : index
      %15 = vector.load %arg7[%c0_13, %c0_14] : memref<8x128xf32, #tpu.memory_space<vmem>>, vector<8x128xf32>
      %c0_15 = arith.constant 0 : index
      %c0_16 = arith.constant 0 : index
      %16 = vector.load %arg5[%c0_15, %c0_16] : memref<1x128xf32, #tpu.memory_space<vmem>>, vector<1x128xf32>
      %17 = vector.broadcast %16 : vector<1x128xf32> to vector<8x128xf32>
      %18 = arith.addf %15, %17 : vector<8x128xf32>
      %c0_17 = arith.constant 0 : index
      %c0_18 = arith.constant 0 : index
      %19 = vector.load %arg6[%c0_17, %c0_18] : memref<8x128xf32, #tpu.memory_space<vmem>>, vector<8x128xf32>
      tpu.vector_store %arg6[%c0_17, %c0_18], %18 {strides = array<i32>} : memref<8x128xf32, #tpu.memory_space<vmem>>, vector<8x128xf32>,
    } else {
    }
    return
  }
  func.func @transform_0(%arg0: i32, %arg1: i32) -> (i32, i32) {
    %c0_i32 = arith.constant 0 : i32
    return %arg0, %arg1 : i32, i32
  }
  func.func @transform_1(%arg0: i32, %arg1: i32) -> (i32, i32) {
    %c0_i32 = arith.constant 0 : i32
    %c0_i32_0 = arith.constant 0 : i32
    return %arg1, %c0_i32 : i32, i32
  }
  func.func @transform_2(%arg0: i32, %arg1: i32) -> (i32, i32) {
    %c0_i32 = arith.constant 0 : i32
    %c0_i32_0 = arith.constant 0 : i32
    %c0_i32_1 = arith.constant 0 : i32
    return %c0_i32, %c0_i32_0 : i32, i32
  }
  func.func @transform_3(%arg0: i32, %arg1: i32) -> (i32, i32) {
    %c0_i32 = arith.constant 0 : i32
    %c0_i32_0 = arith.constant 0 : i32
    %c0_i32_1 = arith.constant 0 : i32
    return %c0_i32, %c0_i32_0 : i32, i32
  }
  func.func @transform_4(%arg0: i32, %arg1: i32) -> (i32, i32) {
    %c0_i32 = arith.constant 0 : i32
    %c0_i32_0 = arith.constant 0 : i32
    return %arg0, %c0_i32 : i32, i32
  }
}

</mosaic_0001>

<llo_original>
// kernel: edge_classifier_forward.3
$region0: #{edge_classifier_forward.3}
  #allocation0 [shape = 'u32[]', space=smem, size = 0x4, offset = 0x4, fixed_abs, tag = 'smem constant byte address 0x4 - core index']
  #allocation1 [shape = 'u32[144,128]{1,0:T(1,128)}', space=vmem, size = 0x12000, scoped, tag = 'internal scratch']
  #allocation2 [shape = 'f32[8,128]{1,0:T(8,128)}', space=vmem, size = 0x1000, scoped, tag = 'scratch operand']
  %s0 = inlined_call_operand.vmem [shape: bf16[8,8], index: 0, kind: input, shape index: {}]
  %s1 = inlined_call_operand.vmem [shape: bf16[8,128], index: 1, kind: input, shape index: {}]
  %s2 = inlined_call_operand.vmem [shape: bf16[128,128], index: 2, kind: input, shape index: {}]
  %s3 = inlined_call_operand.vmem [shape: f32[1,128], index: 3, kind: input, shape index: {}]
  %s4 = inlined_call_operand.vmem [shape: bf16[8,128], index: 4, kind: output, shape index: {}]
  %s5 = sld [smem:[#allocation0]]
  $region34: #{edge_classifier_forward.3} parent=0
    _
  %s7 = ssub.s32 1, %s5
  %s8 = scalar_select 0, %s7, %s5
  // Predicated region
  $region2: #{edge_classifier_forward.3} parent=0 // pred_check
    _
  $region3: #{edge_classifier_forward.3} parent=0 // pred_check_branch
    %10 = sbr.rel (0) target = $region5
  $region4: #{edge_classifier_forward.3} parent=0 // pred_region
    _
  $region5: #{edge_classifier_forward.3} parent=0 // pred_fallthru
    _
  // Predicated region
  $region6: #{edge_classifier_forward.3} parent=0 // pred_check
    _
  $region7: #{edge_classifier_forward.3} parent=0 // pred_check_branch
    %12 = sbr.rel (0) target = $region9
  $region8: #{edge_classifier_forward.3} parent=0 // pred_region
    _
  $region9: #{edge_classifier_forward.3} parent=0 // pred_fallthru
    _
  // Predicated region
  $region10: #{edge_classifier_forward.3} parent=0 // pred_check
    _
  $region11: #{edge_classifier_forward.3} parent=0 // pred_check_branch
    %14 = sbr.rel (0) target = $region13
  $region12: #{edge_classifier_forward.3} parent=0 // pred_region
    _
  $region13: #{edge_classifier_forward.3} parent=0 // pred_fallthru
    _
  // Predicated region
  $region14: #{edge_classifier_forward.3} parent=0 // pred_check
    _
  $region15: #{edge_classifier_forward.3} parent=0 // pred_check_branch
    %16 = sbr.rel (0) target = $region17
  $region16: #{edge_classifier_forward.3} parent=0 // pred_region
    _
  $region17: #{edge_classifier_forward.3} parent=0 // pred_fallthru
    _
  %p18 = scmp.eq.s32.totalorder 0, 0
  // Predicated region
  $region18: #{edge_classifier_forward.3} parent=0 // pred_check
    %p19 = pneg %p18
  $region19: #{edge_classifier_forward.3} parent=0 // pred_check_branch
    %21 = sbr.rel (%p19) target = $region21
  $region20: #{edge_classifier_forward.3} parent=0 // pred_region
    %22 = vst [vmem:[#allocation2] sm:$0xff] 0.0
  $region21: #{edge_classifier_forward.3} parent=0 // pred_fallthru
    _
  %v23 = vld [vmem:[%s1] sm:$0xf]
  %v24 = vld [vmem:[%s2] sm:$0xf]
  %v25 = vld [vmem:[%s2 + $0x4] sm:$0xf]
  %v26 = vld [vmem:[%s2 + $0x8] sm:$0xf]
  %v27 = vld [vmem:[%s2 + $0xc] sm:$0xf]
  %v28 = vld [vmem:[%s2 + $0x10] sm:$0xf]
  %v29 = vld [vmem:[%s2 + $0x14] sm:$0xf]
  %v30 = vld [vmem:[%s2 + $0x18] sm:$0xf]
  %v31 = vld [vmem:[%s2 + $0x1c] sm:$0xf]
  %v32 = vld [vmem:[%s2 + $0x20] sm:$0xf]
  %v33 = vld [vmem:[%s2 + $0x24] sm:$0xf]
  %v34 = vld [vmem:[%s2 + $0x28] sm:$0xf]
  %v35 = vld [vmem:[%s2 + $0x2c] sm:$0xf]
  %v36 = vld [vmem:[%s2 + $0x30] sm:$0xf]
  %v37 = vld [vmem:[%s2 + $0x34] sm:$0xf]
  %v38 = vld [vmem:[%s2 + $0x38] sm:$0xf]
  %v39 = vld [vmem:[%s2 + $0x3c] sm:$0xf]
  %v56 = vunpack.c.l.b16 %v24
  %v57 = vunpack.c.l.b16 %v25
  %v58 = vunpack.c.l.b16 %v26
  %v59 = vunpack.c.l.b16 %v27
  %v60 = vunpack.c.l.b16 %v28
  %v61 = vunpack.c.l.b16 %v29
  %v62 = vunpack.c.l.b16 %v30
  %v63 = vunpack.c.l.b16 %v31
  %v64 = vunpack.c.l.b16 %v32
  %v65 = vunpack.c.l.b16 %v33
  %v66 = vunpack.c.l.b16 %v34
  %v67 = vunpack.c.l.b16 %v35
  %v68 = vunpack.c.l.b16 %v36
  %v69 = vunpack.c.l.b16 %v37
  %v70 = vunpack.c.l.b16 %v38
  %v71 = vunpack.c.l.b16 %v39
  %v72 = vpack.c.b16 %v57, %v56
  %v73 = vpack.c.b16 %v59, %v58
  %v74 = vpack.c.b16 %v61, %v60
  %v75 = vpack.c.b16 %v63, %v62
  %v76 = vpack.c.b16 %v65, %v64
  %v77 = vpack.c.b16 %v67, %v66
  %v78 = vpack.c.b16 %v69, %v68
  %v79 = vpack.c.b16 %v71, %v70
  %88 = vmatprep.subr.bf16.mxu0 0
  %89 = vmatpush1.bf16.msra.mxu0 %v72
  %90 = vmatprep.subr.bf16.mxu0 0
  %91 = vmatpush1.bf16.msra.mxu0 %v73
  %92 = vmatprep.subr.bf16.mxu0 0
  %93 = vmatpush1.bf16.msra.mxu0 %v74
  %94 = vmatprep.subr.bf16.mxu0 0
  %95 = vmatpush1.bf16.msra.mxu0 %v75
  %96 = vmatprep.subr.bf16.mxu0 0
  %97 = vmatpush1.bf16.msra.mxu0 %v76
  %98 = vmatprep.subr.bf16.mxu0 0
  %99 = vmatpush1.bf16.msra.mxu0 %v77
  %100 = vmatprep.subr.bf16.mxu0 0
  %101 = vmatpush1.bf16.msra.mxu0 %v78
  %102 = vmatprep.subr.bf16.mxu0 0
  %103 = vmatpush1.bf16.msra.mxu0 %v79
  %104 = vmatprep.subr.bf16.mxu0 0
  %105 = vmatpush1.bf16.msra.mxu0 0
  %106 = vmatprep.subr.bf16.mxu0 0
  %107 = vmatpush1.bf16.msra.mxu0 0
  %108 = vmatprep.subr.bf16.mxu0 0
  %109 = vmatpush1.bf16.msra.mxu0 0
  %110 = vmatprep.subr.bf16.mxu0 0
  %111 = vmatpush1.bf16.msra.mxu0 0
  %112 = vmatprep.subr.bf16.mxu0 0
  %113 = vmatpush1.bf16.msra.mxu0 0
  %114 = vmatprep.subr.bf16.mxu0 0
  %115 = vmatpush1.bf16.msra.mxu0 0
  %116 = vmatprep.subr.bf16.mxu0 0
  %117 = vmatpush1.bf16.msra.mxu0 0
  %118 = vmatprep.subr.bf16.mxu0 0
  %119 = vmatpush1.bf16.msra.mxu0 0
  %120 = vmatprep.mubr.bf16.mxu0 0
  %121 = vmatmul.mubr.bf16.gmra.mrb[0].mxu0 %v23
  %v122 = vpop.f32.mrb[0].mxu0
  %v123 = vadd.f32 0.0, %v122
  %v124 = vpop.f32.mrb[0].mxu0
  %v125 = vpop.f32.mrb[0].mxu0
  %v126 = vpop.f32.mrb[0].mxu0
  %127 = vdwg.mxu0
  %v128 = vld [vmem:[#allocation2] sm:$0xff]
  %v129 = vld [vmem:[%s0] sm:$0xf]
  %v130 = vpack.c.bf16 %v123, %v123
  %vm131 = vcmask 64512
  %v133 = vsel %vm131, %v129, 0
  %vm135 = vcmask 1043456
  %v137 = vsel %vm135, %v130, 0
  %139 = vmatprep.subr.bf16.mxu0 0
  %140 = vmatpush1.bf16.msra.mxu0 %v137
  %141 = vmatprep.subr.bf16.mxu0 0
  %142 = vmatpush1.bf16.msra.mxu0 0
  %143 = vmatprep.subr.bf16.mxu0 0
  %144 = vmatpush1.bf16.msra.mxu0 0
  %145 = vmatprep.subr.bf16.mxu0 0
  %146 = vmatpush1.bf16.msra.mxu0 0
  %147 = vmatprep.subr.bf16.mxu0 0
  %148 = vmatpush1.bf16.msra.mxu0 0
  %149 = vmatprep.subr.bf16.mxu0 0
  %150 = vmatpush1.bf16.msra.mxu0 0
  %151 = vmatprep.subr.bf16.mxu0 0
  %152 = vmatpush1.bf16.msra.mxu0 0
  %153 = vmatprep.subr.bf16.mxu0 0
  %154 = vmatpush1.bf16.msra.mxu0 0
  %155 = vmatprep.subr.bf16.mxu0 0
  %156 = vmatpush1.bf16.msra.mxu0 0
  %157 = vmatprep.subr.bf16.mxu0 0
  %158 = vmatpush1.bf16.msra.mxu0 0
  %159 = vmatprep.subr.bf16.mxu0 0
  %160 = vmatpush1.bf16.msra.mxu0 0
  %161 = vmatprep.subr.bf16.mxu0 0
  %162 = vmatpush1.bf16.msra.mxu0 0
  %163 = vmatprep.subr.bf16.mxu0 0
  %164 = vmatpush1.bf16.msra.mxu0 0
  %165 = vmatprep.subr.bf16.mxu0 0
  %166 = vmatpush1.bf16.msra.mxu0 0
  %167 = vmatprep.subr.bf16.mxu0 0
  %168 = vmatpush1.bf16.msra.mxu0 0
  %169 = vmatprep.subr.bf16.mxu0 0
  %170 = vmatpush1.bf16.msra.mxu0 0
  %171 = vmatprep.mubr.bf16.mxu0 0
  %172 = vmatmul.mubr.bf16.gmra.mrb[0].mxu0 %v133
  %v173 = vpop.f32.mrb[0].mxu0
  %v174 = vadd.f32 0.0, %v173
  %v175 = vpop.f32.mrb[0].mxu0
  %v176 = vpop.f32.mrb[0].mxu0
  %v177 = vpop.f32.mrb[0].mxu0
  %178 = vdwg.mxu0
  %v179 = vadd.f32 %v128, %v174
  %180 = vst [vmem:[#allocation2] sm:$0xff] %v179
  // Predicated region
  $region22: #{edge_classifier_forward.3} parent=0 // pred_check
    %p181 = pneg %p18
  $region23: #{edge_classifier_forward.3} parent=0 // pred_check_branch
    %183 = sbr.rel (%p181) target = $region25
  $region24: #{edge_classifier_forward.3} parent=0 // pred_region
    %v184 = vld [vmem:[#allocation2] sm:$0xff]
    %v185 = vld [vmem:[%s3] sm:$0x1]
    %v187 = vlaneseq
    %v188 = vshrl.u32 %v187, 7
    %v189 = vsub.s32 0, %v188
    %v190 = vrot.slane %v185, %v189
    %v192 = vadd.f32 %v184, %v190
    %v193 = vmax.f32 %v192, 0.0
    %v194 = vpack.c.bf16 %v193, %v193
    %195 = vst [vmem:[%s4] sm:$0xf] %v194
  $region25: #{edge_classifier_forward.3} parent=0 // pred_fallthru
    _
  // Predicated region
  $region26: #{edge_classifier_forward.3} parent=0 // pred_check
    _
  $region27: #{edge_classifier_forward.3} parent=0 // pred_check_branch
    %197 = sbr.rel (0) target = $region29
  $region28: #{edge_classifier_forward.3} parent=0 // pred_region
    _
  $region29: #{edge_classifier_forward.3} parent=0 // pred_fallthru
    _
  // Predicated region
  $region30: #{edge_classifier_forward.3} parent=0 // pred_check
    _
  $region31: #{edge_classifier_forward.3} parent=0 // pred_check_branch
    %199 = sbr.rel (0) target = $region33
  $region32: #{edge_classifier_forward.3} parent=0 // pred_region
    _
  $region33: #{edge_classifier_forward.3} parent=0 // pred_fallthru
    _

// kernel: edge_classifier_forward.4
$region0: #{edge_classifier_forward.4}
  #allocation0 [shape = 'u32[]', space=smem, size = 0x4, offset = 0x4, fixed_abs, tag = 'smem constant byte address 0x4 - core index']
  #allocation1 [shape = 'u32[144,128]{1,0:T(1,128)}', space=vmem, size = 0x12000, scoped, tag = 'internal scratch']
  #allocation2 [shape = 'f32[8,128]{1,0:T(8,128)}', space=vmem, size = 0x1000, scoped, tag = 'scratch operand']
  %s0 = inlined_call_operand.vmem [shape: bf16[8,8], index: 0, kind: input, shape index: {}]
  %s1 = inlined_call_operand.vmem [shape: bf16[8,128], index: 1, kind: input, shape index: {}]
  %s2 = inlined_call_operand.vmem [shape: bf16[128,128], index: 2, kind: input, shape index: {}]
  %s3 = inlined_call_operand.vmem [shape: f32[1,128], index: 3, kind: input, shape index: {}]
  %s4 = inlined_call_operand.vmem [shape: f32[8,128], index: 4, kind: output, shape index: {}]
  %s5 = sld [smem:[#allocation0]]
  $region34: #{edge_classifier_forward.4} parent=0
    _
  %s7 = ssub.s32 1, %s5
  %s8 = scalar_select 0, %s7, %s5
  // Predicated region
  $region2: #{edge_classifier_forward.4} parent=0 // pred_check
    _
  $region3: #{edge_classifier_forward.4} parent=0 // pred_check_branch
    %10 = sbr.rel (0) target = $region5
  $region4: #{edge_classifier_forward.4} parent=0 // pred_region
    _
  $region5: #{edge_classifier_forward.4} parent=0 // pred_fallthru
    _
  // Predicated region
  $region6: #{edge_classifier_forward.4} parent=0 // pred_check
    _
  $region7: #{edge_classifier_forward.4} parent=0 // pred_check_branch
    %12 = sbr.rel (0) target = $region9
  $region8: #{edge_classifier_forward.4} parent=0 // pred_region
    _
  $region9: #{edge_classifier_forward.4} parent=0 // pred_fallthru
    _
  // Predicated region
  $region10: #{edge_classifier_forward.4} parent=0 // pred_check
    _
  $region11: #{edge_classifier_forward.4} parent=0 // pred_check_branch
    %14 = sbr.rel (0) target = $region13
  $region12: #{edge_classifier_forward.4} parent=0 // pred_region
    _
  $region13: #{edge_classifier_forward.4} parent=0 // pred_fallthru
    _
  // Predicated region
  $region14: #{edge_classifier_forward.4} parent=0 // pred_check
    _
  $region15: #{edge_classifier_forward.4} parent=0 // pred_check_branch
    %16 = sbr.rel (0) target = $region17
  $region16: #{edge_classifier_forward.4} parent=0 // pred_region
    _
  $region17: #{edge_classifier_forward.4} parent=0 // pred_fallthru
    _
  %p18 = scmp.eq.s32.totalorder 0, 0
  // Predicated region
  $region18: #{edge_classifier_forward.4} parent=0 // pred_check
    %p19 = pneg %p18
  $region19: #{edge_classifier_forward.4} parent=0 // pred_check_branch
    %21 = sbr.rel (%p19) target = $region21
  $region20: #{edge_classifier_forward.4} parent=0 // pred_region
    %22 = vst [vmem:[#allocation2] sm:$0xff] 0.0
  $region21: #{edge_classifier_forward.4} parent=0 // pred_fallthru
    _
  %v23 = vld [vmem:[%s1] sm:$0xf]
  %v24 = vld [vmem:[%s2] sm:$0xf]
  %v25 = vld [vmem:[%s2 + $0x4] sm:$0xf]
  %v26 = vld [vmem:[%s2 + $0x8] sm:$0xf]
  %v27 = vld [vmem:[%s2 + $0xc] sm:$0xf]
  %v28 = vld [vmem:[%s2 + $0x10] sm:$0xf]
  %v29 = vld [vmem:[%s2 + $0x14] sm:$0xf]
  %v30 = vld [vmem:[%s2 + $0x18] sm:$0xf]
  %v31 = vld [vmem:[%s2 + $0x1c] sm:$0xf]
  %v32 = vld [vmem:[%s2 + $0x20] sm:$0xf]
  %v33 = vld [vmem:[%s2 + $0x24] sm:$0xf]
  %v34 = vld [vmem:[%s2 + $0x28] sm:$0xf]
  %v35 = vld [vmem:[%s2 + $0x2c] sm:$0xf]
  %v36 = vld [vmem:[%s2 + $0x30] sm:$0xf]
  %v37 = vld [vmem:[%s2 + $0x34] sm:$0xf]
  %v38 = vld [vmem:[%s2 + $0x38] sm:$0xf]
  %v39 = vld [vmem:[%s2 + $0x3c] sm:$0xf]
  %v56 = vunpack.c.l.b16 %v24
  %v57 = vunpack.c.l.b16 %v25
  %v58 = vunpack.c.l.b16 %v26
  %v59 = vunpack.c.l.b16 %v27
  %v60 = vunpack.c.l.b16 %v28
  %v61 = vunpack.c.l.b16 %v29
  %v62 = vunpack.c.l.b16 %v30
  %v63 = vunpack.c.l.b16 %v31
  %v64 = vunpack.c.l.b16 %v32
  %v65 = vunpack.c.l.b16 %v33
  %v66 = vunpack.c.l.b16 %v34
  %v67 = vunpack.c.l.b16 %v35
  %v68 = vunpack.c.l.b16 %v36
  %v69 = vunpack.c.l.b16 %v37
  %v70 = vunpack.c.l.b16 %v38
  %v71 = vunpack.c.l.b16 %v39
  %v72 = vpack.c.b16 %v57, %v56
  %v73 = vpack.c.b16 %v59, %v58
  %v74 = vpack.c.b16 %v61, %v60
  %v75 = vpack.c.b16 %v63, %v62
  %v76 = vpack.c.b16 %v65, %v64
  %v77 = vpack.c.b16 %v67, %v66
  %v78 = vpack.c.b16 %v69, %v68
  %v79 = vpack.c.b16 %v71, %v70
  %88 = vmatprep.subr.bf16.mxu0 0
  %89 = vmatpush1.bf16.msra.mxu0 %v72
  %90 = vmatprep.subr.bf16.mxu0 0
  %91 = vmatpush1.bf16.msra.mxu0 %v73
  %92 = vmatprep.subr.bf16.mxu0 0
  %93 = vmatpush1.bf16.msra.mxu0 %v74
  %94 = vmatprep.subr.bf16.mxu0 0
  %95 = vmatpush1.bf16.msra.mxu0 %v75
  %96 = vmatprep.subr.bf16.mxu0 0
  %97 = vmatpush1.bf16.msra.mxu0 %v76
  %98 = vmatprep.subr.bf16.mxu0 0
  %99 = vmatpush1.bf16.msra.mxu0 %v77
  %100 = vmatprep.subr.bf16.mxu0 0
  %101 = vmatpush1.bf16.msra.mxu0 %v78
  %102 = vmatprep.subr.bf16.mxu0 0
  %103 = vmatpush1.bf16.msra.mxu0 %v79
  %104 = vmatprep.subr.bf16.mxu0 0
  %105 = vmatpush1.bf16.msra.mxu0 0
  %106 = vmatprep.subr.bf16.mxu0 0
  %107 = vmatpush1.bf16.msra.mxu0 0
  %108 = vmatprep.subr.bf16.mxu0 0
  %109 = vmatpush1.bf16.msra.mxu0 0
  %110 = vmatprep.subr.bf16.mxu0 0
  %111 = vmatpush1.bf16.msra.mxu0 0
  %112 = vmatprep.subr.bf16.mxu0 0
  %113 = vmatpush1.bf16.msra.mxu0 0
  %114 = vmatprep.subr.bf16.mxu0 0
  %115 = vmatpush1.bf16.msra.mxu0 0
  %116 = vmatprep.subr.bf16.mxu0 0
  %117 = vmatpush1.bf16.msra.mxu0 0
  %118 = vmatprep.subr.bf16.mxu0 0
  %119 = vmatpush1.bf16.msra.mxu0 0
  %120 = vmatprep.mubr.bf16.mxu0 0
  %121 = vmatmul.mubr.bf16.gmra.mrb[0].mxu0 %v23
  %v122 = vpop.f32.mrb[0].mxu0
  %v123 = vadd.f32 0.0, %v122
  %v124 = vpop.f32.mrb[0].mxu0
  %v125 = vpop.f32.mrb[0].mxu0
  %v126 = vpop.f32.mrb[0].mxu0
  %127 = vdwg.mxu0
  %v128 = vld [vmem:[#allocation2] sm:$0xff]
  %v129 = vld [vmem:[%s0] sm:$0xf]
  %v130 = vpack.c.bf16 %v123, %v123
  %vm131 = vcmask 64512
  %v133 = vsel %vm131, %v129, 0
  %vm135 = vcmask 1043456
  %v137 = vsel %vm135, %v130, 0
  %139 = vmatprep.subr.bf16.mxu0 0
  %140 = vmatpush1.bf16.msra.mxu0 %v137
  %141 = vmatprep.subr.bf16.mxu0 0
  %142 = vmatpush1.bf16.msra.mxu0 0
  %143 = vmatprep.subr.bf16.mxu0 0
  %144 = vmatpush1.bf16.msra.mxu0 0
  %145 = vmatprep.subr.bf16.mxu0 0
  %146 = vmatpush1.bf16.msra.mxu0 0
  %147 = vmatprep.subr.bf16.mxu0 0
  %148 = vmatpush1.bf16.msra.mxu0 0
  %149 = vmatprep.subr.bf16.mxu0 0
  %150 = vmatpush1.bf16.msra.mxu0 0
  %151 = vmatprep.subr.bf16.mxu0 0
  %152 = vmatpush1.bf16.msra.mxu0 0
  %153 = vmatprep.subr.bf16.mxu0 0
  %154 = vmatpush1.bf16.msra.mxu0 0
  %155 = vmatprep.subr.bf16.mxu0 0
  %156 = vmatpush1.bf16.msra.mxu0 0
  %157 = vmatprep.subr.bf16.mxu0 0
  %158 = vmatpush1.bf16.msra.mxu0 0
  %159 = vmatprep.subr.bf16.mxu0 0
  %160 = vmatpush1.bf16.msra.mxu0 0
  %161 = vmatprep.subr.bf16.mxu0 0
  %162 = vmatpush1.bf16.msra.mxu0 0
  %163 = vmatprep.subr.bf16.mxu0 0
  %164 = vmatpush1.bf16.msra.mxu0 0
  %165 = vmatprep.subr.bf16.mxu0 0
  %166 = vmatpush1.bf16.msra.mxu0 0
  %167 = vmatprep.subr.bf16.mxu0 0
  %168 = vmatpush1.bf16.msra.mxu0 0
  %169 = vmatprep.subr.bf16.mxu0 0
  %170 = vmatpush1.bf16.msra.mxu0 0
  %171 = vmatprep.mubr.bf16.mxu0 0
  %172 = vmatmul.mubr.bf16.gmra.mrb[0].mxu0 %v133
  %v173 = vpop.f32.mrb[0].mxu0
  %v174 = vadd.f32 0.0, %v173
  %v175 = vpop.f32.mrb[0].mxu0
  %v176 = vpop.f32.mrb[0].mxu0
  %v177 = vpop.f32.mrb[0].mxu0
  %178 = vdwg.mxu0
  %v179 = vadd.f32 %v128, %v174
  %180 = vst [vmem:[#allocation2] sm:$0xff] %v179
  // Predicated region
  $region22: #{edge_classifier_forward.4} parent=0 // pred_check
    %p181 = pneg %p18
  $region23: #{edge_classifier_forward.4} parent=0 // pred_check_branch
    %183 = sbr.rel (%p181) target = $region25
  $region24: #{edge_classifier_forward.4} parent=0 // pred_region
    %v184 = vld [vmem:[#allocation2] sm:$0xff]
    %v185 = vld [vmem:[%s3] sm:$0x1]
    %v187 = vlaneseq
    %v188 = vshrl.u32 %v187, 7
    %v189 = vsub.s32 0, %v188
    %v190 = vrot.slane %v185, %v189
    %v192 = vadd.f32 %v184, %v190
    %193 = vst [vmem:[%s4] sm:$0xff] %v192
  $region25: #{edge_classifier_forward.4} parent=0 // pred_fallthru
    _
  // Predicated region
  $region26: #{edge_classifier_forward.4} parent=0 // pred_check
    _
  $region27: #{edge_classifier_forward.4} parent=0 // pred_check_branch
    %195 = sbr.rel (0) target = $region29
  $region28: #{edge_classifier_forward.4} parent=0 // pred_region
    _
  $region29: #{edge_classifier_forward.4} parent=0 // pred_fallthru
    _
  // Predicated region
  $region30: #{edge_classifier_forward.4} parent=0 // pred_check
    _
  $region31: #{edge_classifier_forward.4} parent=0 // pred_check_branch
    %197 = sbr.rel (0) target = $region33
  $region32: #{edge_classifier_forward.4} parent=0 // pred_region
    _
  $region33: #{edge_classifier_forward.4} parent=0 // pred_fallthru
    _

// kernel: edge_classifier_forward.5
$region0: #{edge_classifier_forward.5}
  #allocation0 [shape = 'u32[]', space=smem, size = 0x4, offset = 0x4, fixed_abs, tag = 'smem constant byte address 0x4 - core index']
  #allocation1 [shape = 'u32[144,128]{1,0:T(1,128)}', space=vmem, size = 0x12000, scoped, tag = 'internal scratch']
  #allocation2 [shape = 'f32[8,128]{1,0:T(8,128)}', space=vmem, size = 0x1000, scoped, tag = 'scratch operand']
  #allocation3 [shape = 'f32[8,128]{1,0:T(8,128)}', space=vmem, size = 0x1000, scoped, tag = 'scratch operand']
  #allocation4 [shape = 's32[1]{0}', space=sflag, size = 0x4, scoped, tag = 'scoped memory for edge_classifier_forward.5']
  #allocation5 [shape = 'u8[512]{0}', space=smem, size = 0x200, scoped, tag = 'prefetched SMEM operand 0']
  #allocation6 [shape = 'u8[512]{0}', space=smem, size = 0x200, scoped, tag = 'prefetched SMEM operand 1']
  %s0 = inlined_call_operand.vmem [shape: s32[16], index: 0, kind: input, shape index: {}]
  %s1 = inlined_call_operand.vmem [shape: s32[16], index: 1, kind: input, shape index: {}]
  %s2 = inlined_call_operand.vmem [shape: f32[8,128], index: 2, kind: input, shape index: {}]
  %s3 = inlined_call_operand.vmem [shape: bf16[128,128], index: 3, kind: input, shape index: {}]
  %s4 = inlined_call_operand.vmem [shape: bf16[128,128], index: 4, kind: input, shape index: {}]
  %s5 = inlined_call_operand.vmem [shape: f32[1,128], index: 5, kind: input, shape index: {}]
  %s6 = inlined_call_operand.vmem [shape: bf16[128,128], index: 6, kind: input, shape index: {}]
  %s7 = inlined_call_operand.vmem [shape: f32[1,128], index: 7, kind: input, shape index: {}]
  %s8 = inlined_call_operand.vmem [shape: f32[16,128], index: 8, kind: output, shape index: {}]
  %s9 = sld [smem:[#allocation0]]
  $region57: #{edge_classifier_forward.5} parent=0
    _
  %s11 = ssub.s32 1, %s9
  %s12 = scalar_select 0, %s11, %s9
  %s13 = sshll.u32 %s0, 4
  %s14 = int_to_ptr.vmem [resolvable:$true] %s13
  %16 = dma.vmem_to_smem %s14, 16, [#allocation5], [#allocation4]
  %s17 = sshll.u32 %s1, 4
  %s18 = int_to_ptr.vmem [resolvable:$true] %s17
  %20 = dma.vmem_to_smem %s18, 16, [#allocation6], [#allocation4]
  %21 = dma.done [#allocation4], 32
  %22 = sfence
  loop: start=0, step=1, limit=4
  $region2: #{edge_classifier_forward.5} parent=0 // loop_pre_header
    _
  $region3: #{edge_classifier_forward.5} parent=0 // loop_header
    %s24 = sphi 0, %s28
    %p25 = scmp.ge.s32.totalorder %s24, 4
    %s32 = sphi 0, %s32
    %s34 = sphi 0, %s32
    %s35 = sphi 0, %s34
    %s49 = sphi 0, %s35
    %s53 = sphi 0, %s53
    %s55 = sphi 0, %s53
    %s56 = sphi 0, %s55
    %s70 = sphi 0, %s56
    %s74 = sphi 0, %s74
    %s76 = sphi 0, %s74
    %s77 = sphi 0, %s76
    %s91 = sphi 0, %s77
    %s95 = sphi 0, %s95
    %s97 = sphi 0, %s95
    %s98 = sphi 0, %s97
    %s112 = sphi 0, %s98
    %s116 = sphi 0, %s116
    %s118 = sphi 0, %s116
    %s119 = sphi 0, %s118
    %s133 = sphi 0, %s119
    %s137 = sphi 0, %s137
    %s139 = sphi 0, %s137
    %s140 = sphi 0, %s139
    %s154 = sphi 0, %s140
    %s160 = sphi 0, %s162
    %s163 = sphi 0, %s160
    %s164 = sphi 0, %s163
    %s180 = sphi 0, %s164
  $region4: #{edge_classifier_forward.5} parent=0 // loop_header_branch
    %27 = sbr.rel (%p25) target = $region8
  $region5: #{edge_classifier_forward.5} parent=0 // loop_body
    %s29 = ssub.s32 %s24, 1
    %s30 = ssub.s32 %s24, 2
    %s31 = sadd.s32 %s24, 1
    %s33 = sadd.s32 %s32, 1
    %p36 = scmp.eq.s32.totalorder %s24, 1
    %p37 = scmp.ne.s32.totalorder %s32, %s34
    %p38 = scmp.eq.s32.totalorder %s24, 0
    %p39 = por %p37, %p38
    %p40 = scmp.ne.s32.totalorder %s32, %s34
    %p41 = scmp.eq.s32.totalorder %s29, 1
    %p42 = por %p40, %p41
    %p43 = scmp.ne.s32.totalorder %s34, %s35
    %p44 = scmp.eq.s32.totalorder %s29, 0
    %p45 = por %p43, %p44
    %p46 = scmp.ne.s32.totalorder %s34, %s35
    %p47 = scmp.eq.s32.totalorder %s30, 1
    %p48 = por %p46, %p47
    %p50 = scmp.ne.s32.totalorder %s35, %s49
    %p51 = scmp.eq.s32.totalorder %s30, 0
    %p52 = por %p50, %p51
    %s54 = sadd.s32 %s53, 1
    %p57 = scmp.eq.s32.totalorder %s24, 1
    %p58 = scmp.ne.s32.totalorder %s53, %s55
    %p59 = scmp.eq.s32.totalorder %s24, 0
    %p60 = por %p58, %p59
    %p61 = scmp.ne.s32.totalorder %s53, %s55
    %p62 = scmp.eq.s32.totalorder %s29, 1
    %p63 = por %p61, %p62
    %p64 = scmp.ne.s32.totalorder %s55, %s56
    %p65 = scmp.eq.s32.totalorder %s29, 0
    %p66 = por %p64, %p65
    %p67 = scmp.ne.s32.totalorder %s55, %s56
    %p68 = scmp.eq.s32.totalorder %s30, 1
    %p69 = por %p67, %p68
    %p71 = scmp.ne.s32.totalorder %s56, %s70
    %p72 = scmp.eq.s32.totalorder %s30, 0
    %p73 = por %p71, %p72
    %s75 = sadd.s32 %s74, 1
    %p78 = scmp.eq.s32.totalorder %s24, 1
    %p79 = scmp.ne.s32.totalorder %s74, %s76
    %p80 = scmp.eq.s32.totalorder %s24, 0
    %p81 = por %p79, %p80
    %p82 = scmp.ne.s32.totalorder %s74, %s76
    %p83 = scmp.eq.s32.totalorder %s29, 1
    %p84 = por %p82, %p83
    %p85 = scmp.ne.s32.totalorder %s76, %s77
    %p86 = scmp.eq.s32.totalorder %s29, 0
    %p87 = por %p85, %p86
    %p88 = scmp.ne.s32.totalorder %s76, %s77
    %p89 = scmp.eq.s32.totalorder %s30, 1
    %p90 = por %p88, %p89
    %p92 = scmp.ne.s32.totalorder %s77, %s91
    %p93 = scmp.eq.s32.totalorder %s30, 0
    %p94 = por %p92, %p93
    %s96 = sadd.s32 %s95, 1
    %p99 = scmp.eq.s32.totalorder %s24, 1
    %p100 = scmp.ne.s32.totalorder %s95, %s97
    %p101 = scmp.eq.s32.totalorder %s24, 0
    %p102 = por %p100, %p101
    %p103 = scmp.ne.s32.totalorder %s95, %s97
    %p104 = scmp.eq.s32.totalorder %s29, 1
    %p105 = por %p103, %p104
    %p106 = scmp.ne.s32.totalorder %s97, %s98
    %p107 = scmp.eq.s32.totalorder %s29, 0
    %p108 = por %p106, %p107
    %p109 = scmp.ne.s32.totalorder %s97, %s98
    %p110 = scmp.eq.s32.totalorder %s30, 1
    %p111 = por %p109, %p110
    %p113 = scmp.ne.s32.totalorder %s98, %s112
    %p114 = scmp.eq.s32.totalorder %s30, 0
    %p115 = por %p113, %p114
    %s117 = sadd.s32 %s116, 1
    %p120 = scmp.eq.s32.totalorder %s24, 1
    %p121 = scmp.ne.s32.totalorder %s116, %s118
    %p122 = scmp.eq.s32.totalorder %s24, 0
    %p123 = por %p121, %p122
    %p124 = scmp.ne.s32.totalorder %s116, %s118
    %p125 = scmp.eq.s32.totalorder %s29, 1
    %p126 = por %p124, %p125
    %p127 = scmp.ne.s32.totalorder %s118, %s119
    %p128 = scmp.eq.s32.totalorder %s29, 0
    %p129 = por %p127, %p128
    %p130 = scmp.ne.s32.totalorder %s118, %s119
    %p131 = scmp.eq.s32.totalorder %s30, 1
    %p132 = por %p130, %p131
    %p134 = scmp.ne.s32.totalorder %s119, %s133
    %p135 = scmp.eq.s32.totalorder %s30, 0
    %p136 = por %p134, %p135
    %s138 = sadd.s32 %s137, 1
    %p141 = scmp.eq.s32.totalorder %s24, 1
    %p142 = scmp.ne.s32.totalorder %s137, %s139
    %p143 = scmp.eq.s32.totalorder %s24, 0
    %p144 = por %p142, %p143
    %p145 = scmp.ne.s32.totalorder %s137, %s139
    %p146 = scmp.eq.s32.totalorder %s29, 1
    %p147 = por %p145, %p146
    %p148 = scmp.ne.s32.totalorder %s139, %s140
    %p149 = scmp.eq.s32.totalorder %s29, 0
    %p150 = por %p148, %p149
    %p151 = scmp.ne.s32.totalorder %s139, %s140
    %p152 = scmp.eq.s32.totalorder %s30, 1
    %p153 = por %p151, %p152
    %p155 = scmp.ne.s32.totalorder %s140, %s154
    %p156 = scmp.eq.s32.totalorder %s30, 0
    %p157 = por %p155, %p156
    %s158 = ssub.s32 %s24, %s31
    %p159 = scmp.eq.s32.totalorder %s158, 0
    %s161 = sadd.s32 %s160, 1
    %s162 = scalar_select %p159, %s160, %s161
    %p165 = pneg %p159
    %p166 = scmp.eq.s32.totalorder %s24, 1
    %p167 = por %p165, %p166
    %p168 = scmp.ne.s32.totalorder %s160, %s163
    %p169 = scmp.eq.s32.totalorder %s24, 0
    %p170 = por %p168, %p169
    %p171 = scmp.ne.s32.totalorder %s160, %s163
    %p172 = scmp.eq.s32.totalorder %s29, 1
    %p173 = por %p171, %p172
    %p174 = scmp.ne.s32.totalorder %s163, %s164
    %p175 = scmp.eq.s32.totalorder %s29, 0
    %p176 = por %p174, %p175
    %p177 = scmp.ne.s32.totalorder %s163, %s164
    %p178 = scmp.eq.s32.totalorder %s30, 1
    %p179 = por %p177, %p178
    %p181 = scmp.ne.s32.totalorder %s164, %s180
    %p182 = scmp.eq.s32.totalorder %s30, 0
    %p183 = por %p181, %p182
    %p184 = scmp.le.s32.totalorder 1, %s24
    %p185 = scmp.lt.s32.totalorder %s24, 3
    %p186 = pnand %p184, %p185
    %p187 = pneg %p186
    // Predicated region
    $region9: #{edge_classifier_forward.5} parent=5 // pred_check
      _
    $region10: #{edge_classifier_forward.5} parent=5 // pred_check_branch
      %189 = sbr.rel (%p186) target = $region12
    $region11: #{edge_classifier_forward.5} parent=5 // pred_region
      %s190 = ssub.s32 %s24, 1
      // Predicated region
      $region13: #{edge_classifier_forward.5} parent=11 // pred_check
        %p191 = pneg %p45
      $region14: #{edge_classifier_forward.5} parent=11 // pred_check_branch
        %193 = sbr.rel (%p191) target = $region16
      $region15: #{edge_classifier_forward.5} parent=11 // pred_region
        _
      $region16: #{edge_classifier_forward.5} parent=11 // pred_fallthru
        _
      // Predicated region
      $region17: #{edge_classifier_forward.5} parent=11 // pred_check
        %p194 = pneg %p66
      $region18: #{edge_classifier_forward.5} parent=11 // pred_check_branch
        %196 = sbr.rel (%p194) target = $region20
      $region19: #{edge_classifier_forward.5} parent=11 // pred_region
        _
      $region20: #{edge_classifier_forward.5} parent=11 // pred_fallthru
        _
      // Predicated region
      $region21: #{edge_classifier_forward.5} parent=11 // pred_check
        %p197 = pneg %p87
      $region22: #{edge_classifier_forward.5} parent=11 // pred_check_branch
        %199 = sbr.rel (%p197) target = $region24
      $region23: #{edge_classifier_forward.5} parent=11 // pred_region
        _
      $region24: #{edge_classifier_forward.5} parent=11 // pred_fallthru
        _
      // Predicated region
      $region25: #{edge_classifier_forward.5} parent=11 // pred_check
        %p200 = pneg %p108
      $region26: #{edge_classifier_forward.5} parent=11 // pred_check_branch
        %202 = sbr.rel (%p200) target = $region28
      $region27: #{edge_classifier_forward.5} parent=11 // pred_region
        _
      $region28: #{edge_classifier_forward.5} parent=11 // pred_fallthru
        _
      // Predicated region
      $region29: #{edge_classifier_forward.5} parent=11 // pred_check
        %p203 = pneg %p129
      $region30: #{edge_classifier_forward.5} parent=11 // pred_check_branch
        %205 = sbr.rel (%p203) target = $region32
      $region31: #{edge_classifier_forward.5} parent=11 // pred_region
        _
      $region32: #{edge_classifier_forward.5} parent=11 // pred_fallthru
        _
      // Predicated region
      $region33: #{edge_classifier_forward.5} parent=11 // pred_check
        %p206 = pneg %p150
      $region34: #{edge_classifier_forward.5} parent=11 // pred_check_branch
        %208 = sbr.rel (%p206) target = $region36
      $region35: #{edge_classifier_forward.5} parent=11 // pred_region
        _
      $region36: #{edge_classifier_forward.5} parent=11 // pred_fallthru
        _
    $region12: #{edge_classifier_forward.5} parent=5 // pred_fallthru
      _
    %p209 = scmp.lt.s32.totalorder %s24, 2
    // Predicated region
    $region37: #{edge_classifier_forward.5} parent=5 // pred_check
      %p210 = pneg %p209
    $region38: #{edge_classifier_forward.5} parent=5 // pred_check_branch
      %212 = sbr.rel (%p210) target = $region40
    $region39: #{edge_classifier_forward.5} parent=5 // pred_region
      _
    $region40: #{edge_classifier_forward.5} parent=5 // pred_fallthru
      _
    %p213 = scmp.le.s32.totalorder 1, %s24
    %p214 = scmp.lt.s32.totalorder %s24, 3
    %p215 = pnand %p213, %p214
    %p216 = pneg %p215
    // Predicated region
    $region41: #{edge_classifier_forward.5} parent=5 // pred_check
      _
    $region42: #{edge_classifier_forward.5} parent=5 // pred_check_branch
      %218 = sbr.rel (%p215) target = $region44
    $region43: #{edge_classifier_forward.5} parent=5 // pred_region
      %s219 = ssub.s32 %s24, 1
      %p220 = pneg %p45
      %p221 = pneg %p42
      %p222 = pneg %p66
      %p223 = pneg %p63
      %p224 = pneg %p87
      %p225 = pneg %p84
      %p226 = pneg %p108
      %p227 = pneg %p105
      %p228 = pneg %p129
      %p229 = pneg %p126
      %p230 = pneg %p150
      %p231 = pneg %p147
      %p232 = pneg %p176
      %p233 = pneg %p173
      %p234 = scmp.lt.s32.totalorder %s29, 1
      %s235 = scalar_select %p234, %s29, 1
      %s236 = smul.addr %s235, 8
      %s237 = scalar_lea.vmem %s8, %s236
      %p238 = scmp.lt.s32.totalorder %s29, 1
      %s239 = scalar_select %p238, %s29, 1
      %s240 = smul.addr %s239, 8
      %s241 = scalar_lea.vmem %s8, %s240
      %s243 = smul.u32 %s29, 8
      %s244 = sld [smem:[#allocation5 + %s243]]
      %s245 = sld [smem:[#allocation6 + %s243]]
      %s246 = scalar_lea.vmem %s2, %s244
      %v247 = vld [vmem:[%s246] sm:$0x1]
      %248 = vst [vmem:[#allocation2] sm:$0x1] %v247
      %s249 = scalar_lea.vmem %s2, %s245
      %v250 = vld [vmem:[%s249] sm:$0x1]
      %251 = vst [vmem:[#allocation3] sm:$0x1] %v250
      %s252 = sadd.s32 %s243, 1
      %s253 = sld [smem:[#allocation5 + %s252]]
      %s254 = sld [smem:[#allocation6 + %s252]]
      %s255 = scalar_lea.vmem %s2, %s253
      %v256 = vld [vmem:[%s255] sm:$0x1]
      %257 = vst [vmem:[#allocation2 + $0x1] sm:$0x1] %v256
      %s258 = scalar_lea.vmem %s2, %s254
      %v259 = vld [vmem:[%s258] sm:$0x1]
      %260 = vst [vmem:[#allocation3 + $0x1] sm:$0x1] %v259
      %s261 = sadd.s32 %s243, 2
      %s262 = sld [smem:[#allocation5 + %s261]]
      %s263 = sld [smem:[#allocation6 + %s261]]
      %s264 = scalar_lea.vmem %s2, %s262
      %v265 = vld [vmem:[%s264] sm:$0x1]
      %266 = vst [vmem:[#allocation2 + $0x2] sm:$0x1] %v265
      %s267 = scalar_lea.vmem %s2, %s263
      %v268 = vld [vmem:[%s267] sm:$0x1]
      %269 = vst [vmem:[#allocation3 + $0x2] sm:$0x1] %v268
      %s270 = sadd.s32 %s243, 3
      %s271 = sld [smem:[#allocation5 + %s270]]
      %s272 = sld [smem:[#allocation6 + %s270]]
      %s273 = scalar_lea.vmem %s2, %s271
      %v274 = vld [vmem:[%s273] sm:$0x1]
      %275 = vst [vmem:[#allocation2 + $0x3] sm:$0x1] %v274
      %s276 = scalar_lea.vmem %s2, %s272
      %v277 = vld [vmem:[%s276] sm:$0x1]
      %278 = vst [vmem:[#allocation3 + $0x3] sm:$0x1] %v277
      %s279 = sadd.s32 %s243, 4
      %s280 = sld [smem:[#allocation5 + %s279]]
      %s281 = sld [smem:[#allocation6 + %s279]]
      %s282 = scalar_lea.vmem %s2, %s280
      %v283 = vld [vmem:[%s282] sm:$0x1]
      %284 = vst [vmem:[#allocation2 + $0x4] sm:$0x1] %v283
      %s285 = scalar_lea.vmem %s2, %s281
      %v286 = vld [vmem:[%s285] sm:$0x1]
      %287 = vst [vmem:[#allocation3 + $0x4] sm:$0x1] %v286
      %s288 = sadd.s32 %s243, 5
      %s289 = sld [smem:[#allocation5 + %s288]]
      %s290 = sld [smem:[#allocation6 + %s288]]
      %s291 = scalar_lea.vmem %s2, %s289
      %v292 = vld [vmem:[%s291] sm:$0x1]
      %293 = vst [vmem:[#allocation2 + $0x5] sm:$0x1] %v292
      %s294 = scalar_lea.vmem %s2, %s290
      %v295 = vld [vmem:[%s294] sm:$0x1]
      %296 = vst [vmem:[#allocation3 + $0x5] sm:$0x1] %v295
      %s297 = sadd.s32 %s243, 6
      %s298 = sld [smem:[#allocation5 + %s297]]
      %s299 = sld [smem:[#allocation6 + %s297]]
      %s300 = scalar_lea.vmem %s2, %s298
      %v301 = vld [vmem:[%s300] sm:$0x1]
      %302 = vst [vmem:[#allocation2 + $0x6] sm:$0x1] %v301
      %s303 = scalar_lea.vmem %s2, %s299
      %v304 = vld [vmem:[%s303] sm:$0x1]
      %305 = vst [vmem:[#allocation3 + $0x6] sm:$0x1] %v304
      %s306 = sadd.s32 %s243, 7
      %s307 = sld [smem:[#allocation5 + %s306]]
      %s308 = sld [smem:[#allocation6 + %s306]]
      %s309 = scalar_lea.vmem %s2, %s307
      %v310 = vld [vmem:[%s309] sm:$0x1]
      %311 = vst [vmem:[#allocation2 + $0x7] sm:$0x1] %v310
      %s312 = scalar_lea.vmem %s2, %s308
      %v313 = vld [vmem:[%s312] sm:$0x1]
      %314 = vst [vmem:[#allocation3 + $0x7] sm:$0x1] %v313
      %v315 = vld [vmem:[#allocation2] sm:$0xff]
      %v316 = vpack.c.bf16 %v315, %v315
      %v317 = vld [vmem:[#allocation3] sm:$0xff]
      %v318 = vpack.c.bf16 %v317, %v317
      %v319 = vld [vmem:[%s3] sm:$0xf]
      %v320 = vld [vmem:[%s3 + $0x4] sm:$0xf]
      %v321 = vld [vmem:[%s3 + $0x8] sm:$0xf]
      %v322 = vld [vmem:[%s3 + $0xc] sm:$0xf]
      %v323 = vld [vmem:[%s3 + $0x10] sm:$0xf]
      %v324 = vld [vmem:[%s3 + $0x14] sm:$0xf]
      %v325 = vld [vmem:[%s3 + $0x18] sm:$0xf]
      %v326 = vld [vmem:[%s3 + $0x1c] sm:$0xf]
      %v327 = vld [vmem:[%s3 + $0x20] sm:$0xf]
      %v328 = vld [vmem:[%s3 + $0x24] sm:$0xf]
      %v329 = vld [vmem:[%s3 + $0x28] sm:$0xf]
      %v330 = vld [vmem:[%s3 + $0x2c] sm:$0xf]
      %v331 = vld [vmem:[%s3 + $0x30] sm:$0xf]
      %v332 = vld [vmem:[%s3 + $0x34] sm:$0xf]
      %v333 = vld [vmem:[%s3 + $0x38] sm:$0xf]
      %v334 = vld [vmem:[%s3 + $0x3c] sm:$0xf]
      %v335 = vld [vmem:[%s4] sm:$0xf]
      %v336 = vld [vmem:[%s4 + $0x4] sm:$0xf]
      %v337 = vld [vmem:[%s4 + $0x8] sm:$0xf]
      %v338 = vld [vmem:[%s4 + $0xc] sm:$0xf]
      %v339 = vld [vmem:[%s4 + $0x10] sm:$0xf]
      %v340 = vld [vmem:[%s4 + $0x14] sm:$0xf]
      %v341 = vld [vmem:[%s4 + $0x18] sm:$0xf]
      %v342 = vld [vmem:[%s4 + $0x1c] sm:$0xf]
      %v343 = vld [vmem:[%s4 + $0x20] sm:$0xf]
      %v344 = vld [vmem:[%s4 + $0x24] sm:$0xf]
      %v345 = vld [vmem:[%s4 + $0x28] sm:$0xf]
      %v346 = vld [vmem:[%s4 + $0x2c] sm:$0xf]
      %v347 = vld [vmem:[%s4 + $0x30] sm:$0xf]
      %v348 = vld [vmem:[%s4 + $0x34] sm:$0xf]
      %v349 = vld [vmem:[%s4 + $0x38] sm:$0xf]
      %v350 = vld [vmem:[%s4 + $0x3c] sm:$0xf]
      %v367 = vunpack.c.l.b16 %v335
      %v368 = vunpack.c.l.b16 %v336
      %v369 = vunpack.c.l.b16 %v337
      %v370 = vunpack.c.l.b16 %v338
      %v371 = vunpack.c.l.b16 %v339
      %v372 = vunpack.c.l.b16 %v340
      %v373 = vunpack.c.l.b16 %v341
      %v374 = vunpack.c.l.b16 %v342
      %v375 = vunpack.c.l.b16 %v343
      %v376 = vunpack.c.l.b16 %v344
      %v377 = vunpack.c.l.b16 %v345
      %v378 = vunpack.c.l.b16 %v346
      %v379 = vunpack.c.l.b16 %v347
      %v380 = vunpack.c.l.b16 %v348
      %v381 = vunpack.c.l.b16 %v349
      %v382 = vunpack.c.l.b16 %v350
      %v383 = vpack.c.b16 %v368, %v367
      %v384 = vpack.c.b16 %v370, %v369
      %v385 = vpack.c.b16 %v372, %v371
      %v386 = vpack.c.b16 %v374, %v373
      %v387 = vpack.c.b16 %v376, %v375
      %v388 = vpack.c.b16 %v378, %v377
      %v389 = vpack.c.b16 %v380, %v379
      %v390 = vpack.c.b16 %v382, %v381
      %399 = vmatprep.subr.bf16.mxu0 0
      %400 = vmatpush1.bf16.msra.mxu0 %v383
      %401 = vmatprep.subr.bf16.mxu0 0
      %402 = vmatpush1.bf16.msra.mxu0 %v384
      %403 = vmatprep.subr.bf16.mxu0 0
      %404 = vmatpush1.bf16.msra.mxu0 %v385
      %405 = vmatprep.subr.bf16.mxu0 0
      %406 = vmatpush1.bf16.msra.mxu0 %v386
      %407 = vmatprep.subr.bf16.mxu0 0
      %408 = vmatpush1.bf16.msra.mxu0 %v387
      %409 = vmatprep.subr.bf16.mxu0 0
      %410 = vmatpush1.bf16.msra.mxu0 %v388
      %411 = vmatprep.subr.bf16.mxu0 0
      %412 = vmatpush1.bf16.msra.mxu0 %v389
      %413 = vmatprep.subr.bf16.mxu0 0
      %414 = vmatpush1.bf16.msra.mxu0 %v390
      %415 = vmatprep.subr.bf16.mxu0 0
      %416 = vmatpush1.bf16.msra.mxu0 0
      %417 = vmatprep.subr.bf16.mxu0 0
      %418 = vmatpush1.bf16.msra.mxu0 0
      %419 = vmatprep.subr.bf16.mxu0 0
      %420 = vmatpush1.bf16.msra.mxu0 0
      %421 = vmatprep.subr.bf16.mxu0 0
      %422 = vmatpush1.bf16.msra.mxu0 0
      %423 = vmatprep.subr.bf16.mxu0 0
      %424 = vmatpush1.bf16.msra.mxu0 0
      %425 = vmatprep.subr.bf16.mxu0 0
      %426 = vmatpush1.bf16.msra.mxu0 0
      %427 = vmatprep.subr.bf16.mxu0 0
      %428 = vmatpush1.bf16.msra.mxu0 0
      %429 = vmatprep.subr.bf16.mxu0 0
      %430 = vmatpush1.bf16.msra.mxu0 0
      %431 = vmatprep.mubr.bf16.mxu0 0
      %432 = vmatmul.mubr.bf16.gmra.mrb[0].mxu0 %v318
      %v433 = vpop.f32.mrb[0].mxu0
      %v434 = vadd.f32 0.0, %v433
      %v435 = vpop.f32.mrb[0].mxu0
      %v436 = vpop.f32.mrb[0].mxu0
      %v437 = vpop.f32.mrb[0].mxu0
      %438 = vdwg.mxu0
      %v455 = vunpack.c.l.b16 %v319
      %v456 = vunpack.c.l.b16 %v320
      %v457 = vunpack.c.l.b16 %v321
      %v458 = vunpack.c.l.b16 %v322
      %v459 = vunpack.c.l.b16 %v323
      %v460 = vunpack.c.l.b16 %v324
      %v461 = vunpack.c.l.b16 %v325
      %v462 = vunpack.c.l.b16 %v326
      %v463 = vunpack.c.l.b16 %v327
      %v464 = vunpack.c.l.b16 %v328
      %v465 = vunpack.c.l.b16 %v329
      %v466 = vunpack.c.l.b16 %v330
      %v467 = vunpack.c.l.b16 %v331
      %v468 = vunpack.c.l.b16 %v332
      %v469 = vunpack.c.l.b16 %v333
      %v470 = vunpack.c.l.b16 %v334
      %v471 = vpack.c.b16 %v456, %v455
      %v472 = vpack.c.b16 %v458, %v457
      %v473 = vpack.c.b16 %v460, %v459
      %v474 = vpack.c.b16 %v462, %v461
      %v475 = vpack.c.b16 %v464, %v463
      %v476 = vpack.c.b16 %v466, %v465
      %v477 = vpack.c.b16 %v468, %v467
      %v478 = vpack.c.b16 %v470, %v469
      %487 = vmatprep.subr.bf16.mxu0 0
      %488 = vmatpush1.bf16.msra.mxu0 %v471
      %489 = vmatprep.subr.bf16.mxu0 0
      %490 = vmatpush1.bf16.msra.mxu0 %v472
      %491 = vmatprep.subr.bf16.mxu0 0
      %492 = vmatpush1.bf16.msra.mxu0 %v473
      %493 = vmatprep.subr.bf16.mxu0 0
      %494 = vmatpush1.bf16.msra.mxu0 %v474
      %495 = vmatprep.subr.bf16.mxu0 0
      %496 = vmatpush1.bf16.msra.mxu0 %v475
      %497 = vmatprep.subr.bf16.mxu0 0
      %498 = vmatpush1.bf16.msra.mxu0 %v476
      %499 = vmatprep.subr.bf16.mxu0 0
      %500 = vmatpush1.bf16.msra.mxu0 %v477
      %501 = vmatprep.subr.bf16.mxu0 0
      %502 = vmatpush1.bf16.msra.mxu0 %v478
      %503 = vmatprep.subr.bf16.mxu0 0
      %504 = vmatpush1.bf16.msra.mxu0 0
      %505 = vmatprep.subr.bf16.mxu0 0
      %506 = vmatpush1.bf16.msra.mxu0 0
      %507 = vmatprep.subr.bf16.mxu0 0
      %508 = vmatpush1.bf16.msra.mxu0 0
      %509 = vmatprep.subr.bf16.mxu0 0
      %510 = vmatpush1.bf16.msra.mxu0 0
      %511 = vmatprep.subr.bf16.mxu0 0
      %512 = vmatpush1.bf16.msra.mxu0 0
      %513 = vmatprep.subr.bf16.mxu0 0
      %514 = vmatpush1.bf16.msra.mxu0 0
      %515 = vmatprep.subr.bf16.mxu0 0
      %516 = vmatpush1.bf16.msra.mxu0 0
      %517 = vmatprep.subr.bf16.mxu0 0
      %518 = vmatpush1.bf16.msra.mxu0 0
      %519 = vmatprep.mubr.bf16.mxu0 0
      %520 = vmatmul.mubr.bf16.gmra.mrb[0].mxu0 %v316
      %v521 = vpop.f32.mrb[0].mxu0
      %v522 = vadd.f32 %v434, %v521
      %v523 = vpop.f32.mrb[0].mxu0
      %v524 = vpop.f32.mrb[0].mxu0
      %v525 = vpop.f32.mrb[0].mxu0
      %526 = vdwg.mxu0
      %v527 = vld [vmem:[%s5] sm:$0x1]
      %v529 = vlaneseq
      %v530 = vshrl.u32 %v529, 7
      %v531 = vsub.s32 0, %v530
      %v532 = vrot.slane %v527, %v531
      %v534 = vadd.f32 %v522, %v532
      %v535 = vmax.f32 %v534, 0.0
      %v536 = vpack.c.bf16 %v535, %v535
      %v537 = vld [vmem:[%s6] sm:$0xf]
      %v538 = vld [vmem:[%s6 + $0x4] sm:$0xf]
      %v539 = vld [vmem:[%s6 + $0x8] sm:$0xf]
      %v540 = vld [vmem:[%s6 + $0xc] sm:$0xf]
      %v541 = vld [vmem:[%s6 + $0x10] sm:$0xf]
      %v542 = vld [vmem:[%s6 + $0x14] sm:$0xf]
      %v543 = vld [vmem:[%s6 + $0x18] sm:$0xf]
      %v544 = vld [vmem:[%s6 + $0x1c] sm:$0xf]
      %v545 = vld [vmem:[%s6 + $0x20] sm:$0xf]
      %v546 = vld [vmem:[%s6 + $0x24] sm:$0xf]
      %v547 = vld [vmem:[%s6 + $0x28] sm:$0xf]
      %v548 = vld [vmem:[%s6 + $0x2c] sm:$0xf]
      %v549 = vld [vmem:[%s6 + $0x30] sm:$0xf]
      %v550 = vld [vmem:[%s6 + $0x34] sm:$0xf]
      %v551 = vld [vmem:[%s6 + $0x38] sm:$0xf]
      %v552 = vld [vmem:[%s6 + $0x3c] sm:$0xf]
      %v553 = vld [vmem:[%s7] sm:$0x1]
      %v555 = vlaneseq
      %v556 = vshrl.u32 %v555, 7
      %v557 = vsub.s32 0, %v556
      %v558 = vrot.slane %v553, %v557
      %v576 = vunpack.c.l.b16 %v537
      %v577 = vunpack.c.l.b16 %v538
      %v578 = vunpack.c.l.b16 %v539
      %v579 = vunpack.c.l.b16 %v540
      %v580 = vunpack.c.l.b16 %v541
      %v581 = vunpack.c.l.b16 %v542
      %v582 = vunpack.c.l.b16 %v543
      %v583 = vunpack.c.l.b16 %v544
      %v584 = vunpack.c.l.b16 %v545
      %v585 = vunpack.c.l.b16 %v546
      %v586 = vunpack.c.l.b16 %v547
      %v587 = vunpack.c.l.b16 %v548
      %v588 = vunpack.c.l.b16 %v549
      %v589 = vunpack.c.l.b16 %v550
      %v590 = vunpack.c.l.b16 %v551
      %v591 = vunpack.c.l.b16 %v552
      %v592 = vpack.c.b16 %v577, %v576
      %v593 = vpack.c.b16 %v579, %v578
      %v594 = vpack.c.b16 %v581, %v580
      %v595 = vpack.c.b16 %v583, %v582
      %v596 = vpack.c.b16 %v585, %v584
      %v597 = vpack.c.b16 %v587, %v586
      %v598 = vpack.c.b16 %v589, %v588
      %v599 = vpack.c.b16 %v591, %v590
      %608 = vmatprep.subr.bf16.mxu0 0
      %609 = vmatpush1.bf16.msra.mxu0 %v592
      %610 = vmatprep.subr.bf16.mxu0 0
      %611 = vmatpush1.bf16.msra.mxu0 %v593
      %612 = vmatprep.subr.bf16.mxu0 0
      %613 = vmatpush1.bf16.msra.mxu0 %v594
      %614 = vmatprep.subr.bf16.mxu0 0
      %615 = vmatpush1.bf16.msra.mxu0 %v595
      %616 = vmatprep.subr.bf16.mxu0 0
      %617 = vmatpush1.bf16.msra.mxu0 %v596
      %618 = vmatprep.subr.bf16.mxu0 0
      %619 = vmatpush1.bf16.msra.mxu0 %v597
      %620 = vmatprep.subr.bf16.mxu0 0
      %621 = vmatpush1.bf16.msra.mxu0 %v598
      %622 = vmatprep.subr.bf16.mxu0 0
      %623 = vmatpush1.bf16.msra.mxu0 %v599
      %624 = vmatprep.subr.bf16.mxu0 0
      %625 = vmatpush1.bf16.msra.mxu0 0
      %626 = vmatprep.subr.bf16.mxu0 0
      %627 = vmatpush1.bf16.msra.mxu0 0
      %628 = vmatprep.subr.bf16.mxu0 0
      %629 = vmatpush1.bf16.msra.mxu0 0
      %630 = vmatprep.subr.bf16.mxu0 0
      %631 = vmatpush1.bf16.msra.mxu0 0
      %632 = vmatprep.subr.bf16.mxu0 0
      %633 = vmatpush1.bf16.msra.mxu0 0
      %634 = vmatprep.subr.bf16.mxu0 0
      %635 = vmatpush1.bf16.msra.mxu0 0
      %636 = vmatprep.subr.bf16.mxu0 0
      %637 = vmatpush1.bf16.msra.mxu0 0
      %638 = vmatprep.subr.bf16.mxu0 0
      %639 = vmatpush1.bf16.msra.mxu0 0
      %640 = vmatprep.mubr.bf16.mxu0 0
      %641 = vmatmul.mubr.bf16.gmra.mrb[0].mxu0 %v536
      %v642 = vpop.f32.mrb[0].mxu0
      %v643 = vadd.f32 %v558, %v642
      %v644 = vpop.f32.mrb[0].mxu0
      %v645 = vpop.f32.mrb[0].mxu0
      %v646 = vpop.f32.mrb[0].mxu0
      %647 = vdwg.mxu0
      %648 = vst [vmem:[%s241] sm:$0xff] %v643
      %p649 = scmp.lt.s32.totalorder %s29, 1
      %s650 = scalar_select %p649, %s29, 1
      %s651 = smul.addr %s650, 8
      %s652 = scalar_lea.vmem %s8, %s651
      // Predicated region
      $region45: #{edge_classifier_forward.5} parent=43 // pred_check
        %p653 = pneg %p173
      $region46: #{edge_classifier_forward.5} parent=43 // pred_check_branch
        %655 = sbr.rel (%p653) target = $region48
      $region47: #{edge_classifier_forward.5} parent=43 // pred_region
        _
      $region48: #{edge_classifier_forward.5} parent=43 // pred_fallthru
        _
    $region44: #{edge_classifier_forward.5} parent=5 // pred_fallthru
      _
    %p656 = scmp.le.s32.totalorder 2, %s24
    // Predicated region
    $region49: #{edge_classifier_forward.5} parent=5 // pred_check
      %p657 = pneg %p656
    $region50: #{edge_classifier_forward.5} parent=5 // pred_check_branch
      %659 = sbr.rel (%p657) target = $region52
    $region51: #{edge_classifier_forward.5} parent=5 // pred_region
      %s660 = ssub.s32 %s24, 2
      // Predicated region
      $region53: #{edge_classifier_forward.5} parent=51 // pred_check
        %p661 = pneg %p179
      $region54: #{edge_classifier_forward.5} parent=51 // pred_check_branch
        %663 = sbr.rel (%p661) target = $region56
      $region55: #{edge_classifier_forward.5} parent=51 // pred_region
        %p664 = scmp.lt.s32.totalorder %s30, 1
        %s665 = scalar_select %p664, %s30, 1
        %s666 = smul.addr %s665, 8
        %s667 = scalar_lea.vmem %s8, %s666
      $region56: #{edge_classifier_forward.5} parent=51 // pred_fallthru
        _
    $region52: #{edge_classifier_forward.5} parent=5 // pred_fallthru
      _
  $region6: #{edge_classifier_forward.5} parent=0 // loop_footer
    %s28 = sadd.s32 1, %s24
  $region7: #{edge_classifier_forward.5} parent=0 // loop_footer_branch
    %23 = sbr.rel target = $region3
  $region8: #{edge_classifier_forward.5} parent=0 // loop_exit
    _

</llo_original>
